<compile_context>
chip_gen: v7x
topology: tpu7x:2x2x1
jax: 0.10.0
libtpu: 0.0.40
codegen_flags: <defaults>
</compile_context>

<pallas_src>
import math
import numpy as np
import jax
import jax.numpy as jnp
from jax import lax
from jax.experimental import pallas as pl
from jax.experimental.pallas import tpu as pltpu


def _make_tcn_kernel(V):
    """Kernel closure; V (joints per time step) is a static layout constant."""

    def kernel(x_ref, w_ref, scale_ref, shift_ref, o_ref):
        # x_ref:     (T_pad*V, C_in)  bf16  full padded rows of one batch elem
        # w_ref:     (K, C_in, C_out) bf16  conv weight per temporal tap
        # scale_ref: (1, C_out)       f32   folded BN scale
        # shift_ref: (1, C_out)       f32   folded BN shift (incl. conv bias)
        # o_ref:     (R, C_out)       f32   one row tile of the output
        R, C_out = o_ref.shape
        K = w_ref.shape[0]
        align = math.gcd(R, V)

        base = pl.program_id(1) * R          # first output row of this tile
        acc = jnp.zeros((R, C_out), jnp.float32)
        for k in range(K):                   # K is a small static int (unrolled)
            start = pl.multiple_of(base + k * V, align)
            xk = x_ref[pl.ds(start, R), :]   # (R, C_in), pure row slice
            acc = acc + jnp.dot(xk, w_ref[k],
                                preferred_element_type=jnp.float32)

        y = acc * scale_ref[0] + shift_ref[0]
        o_ref[...] = y.astype(o_ref.dtype)

    return kernel


def _choose_row_tile(rows_out, target=256):
    """Largest multiple-of-8 divisor of rows_out that is <= target.

    Falls back to the full extent (always legal: block == array dim)."""
    best = rows_out
    for cand in range(8, min(target, rows_out) + 1, 8):
        if rows_out % cand == 0:
            best = cand
    return best


def unit_tcn_forward(x_nchw, weight, conv_bias, bn_gamma, bn_beta,
                     bn_mean, bn_var, *, kernel_size=5, stride=1, eps=1e-5):
    """x_nchw: (N, C_in, T, V) float32.  Returns (N, C_out, T_out, V) float32."""
    assert stride == 1  # TODO(synk): strided temporal output needs a strided pl.ds
    N, C_in, T, V = x_nchw.shape
    C_out = weight.shape[0]
    K = kernel_size
    pad = (K - 1) // 2
    T_out = T                      # stride == 1 with symmetric padding
    T_pad = T + 2 * pad

    # Glue: NCHW -> channels-last -> pad T -> flatten (T,V) rows -> bf16.
    # Single expression so XLA fuses it into one copy (one HBM pass).
    x = jnp.transpose(x_nchw, (0, 2, 3, 1))                      # (N, T, V, C_in)
    x = jnp.pad(x, ((0, 0), (pad, pad), (0, 0), (0, 0)))         # (N, T_pad, V, C_in)
    x = x.reshape(N, T_pad * V, C_in).astype(jnp.bfloat16)       # (N, rows_in, C_in)

    # Weights: (C_out, C_in, K, 1) -> (K, C_in, C_out), bf16 for the MXU.
    w = jnp.transpose(weight[:, :, :, 0], (2, 1, 0)).astype(jnp.bfloat16)

    # Fold conv bias + inference BatchNorm into a per-output-channel affine (f32).
    inv_std = 1.0 / jnp.sqrt(bn_var.astype(jnp.float32) + eps)
    scale = (bn_gamma * inv_std).reshape(1, C_out).astype(jnp.float32)
    shift = ((conv_bias - bn_mean) * bn_gamma * inv_std + bn_beta)
    shift = shift.reshape(1, C_out).astype(jnp.float32)

    rows_in = T_pad * V
    rows_out = T_out * V
    R = _choose_row_tile(rows_out)            # output rows per grid step
    num_tiles = rows_out // R

    out = pl.pallas_call(
        _make_tcn_kernel(V),
        out_shape=jax.ShapeDtypeStruct((N, rows_out, C_out), jnp.float32),
        grid_spec=pltpu.PrefetchScalarGridSpec(
            num_scalar_prefetch=0,
            grid=(N, num_tiles),
            in_specs=[
                # Full padded rows of one batch element; index_map ignores the
                # tile axis so the block stays resident across row tiles.
                pl.BlockSpec((pl.Squeezed(), rows_in, C_in),
                             lambda n, t: (n, 0, 0)),
                pl.BlockSpec((K, C_in, C_out), lambda n, t: (0, 0, 0)),
                pl.BlockSpec((1, C_out), lambda n, t: (0, 0)),
                pl.BlockSpec((1, C_out), lambda n, t: (0, 0)),
            ],
            out_specs=pl.BlockSpec((pl.Squeezed(), R, C_out),
                                   lambda n, t: (n, t, 0)),
        ),
        compiler_params=pltpu.CompilerParams(
            # Both axes are independent -> megacore-friendly on v7x.
            dimension_semantics=("parallel", "parallel")),
    )(x, w, scale, shift)

    # Back to NCHW: (N, C_out, T_out, V)
    return jnp.transpose(out.reshape(N, T_out, V, C_out), (0, 3, 1, 2))


def _reference(x_nchw, weight, conv_bias, bn_gamma, bn_beta, bn_mean, bn_var,
               *, kernel_size=5, stride=1, eps=1e-5):
    """Independent f32 reference using lax.conv_general_dilated."""
    pad = (kernel_size - 1) // 2
    x = jnp.transpose(x_nchw, (0, 2, 3, 1))                      # NHWC (H=T, W=V)
    k = jnp.transpose(weight, (2, 3, 1, 0))                      # HWIO
    y = lax.conv_general_dilated(
        x, k, window_strides=(stride, 1),
        padding=((pad, pad), (0, 0)),
        dimension_numbers=("NHWC", "HWIO", "NHWC"))
    y = y + conv_bias.reshape(1, 1, 1, -1)
    y = (y - bn_mean) / jnp.sqrt(bn_var + eps) * bn_gamma + bn_beta
    return jnp.transpose(y, (0, 3, 1, 2))


if __name__ == "__main__":
    # Small shapes consistent with the module: (N, C_in, T, V).
    # T=32 gives two row tiles so the tile-offset path is exercised.
    N, C_in, C_out, T, V = 2, 4, 8, 32, 16
    K, stride = 5, 1

    key = jax.random.PRNGKey(0)
    kx, kw = jax.random.split(key)

    x = jax.random.normal(kx, (N, C_in, T, V), dtype=jnp.float32)

    # conv_init: kaiming_normal_(weight, mode='fan_out') -> std = sqrt(2/fan_out),
    # fan_out = C_out * K * 1; bias -> 0.
    fan_out = C_out * K * 1
    std = math.sqrt(2.0 / fan_out)
    weight = std * jax.random.normal(kw, (C_out, C_in, K, 1), dtype=jnp.float32)
    conv_bias = jnp.zeros((C_out,), jnp.float32)

    # bn_init(bn, 1): gamma=1, beta=0; fresh running stats mean=0, var=1.
    bn_gamma = jnp.ones((C_out,), jnp.float32)
    bn_beta = jnp.zeros((C_out,), jnp.float32)
    bn_mean = jnp.zeros((C_out,), jnp.float32)
    bn_var = jnp.ones((C_out,), jnp.float32)

    y = unit_tcn_forward(x, weight, conv_bias, bn_gamma, bn_beta, bn_mean,
                         bn_var, kernel_size=K, stride=stride)
    y = jax.block_until_ready(y)

    y_ref = _reference(x, weight, conv_bias, bn_gamma, bn_beta, bn_mean,
                       bn_var, kernel_size=K, stride=stride)
    # bf16 MXU inputs (f32 accumulation) -> loosened tolerance per review.
    np.testing.assert_allclose(np.asarray(y), np.asarray(y_ref),
                               rtol=2e-2, atol=2e-2)
    print("KERNEL_OK")
</pallas_src>

<mosaic_0001>
module attributes {stable_mosaic.version = 11 : i64} {
  func.func @kernel(%arg0: i32, %arg1: i32, %arg2: memref<1x576x4xbf16, #tpu.memory_space<vmem>>, %arg3: memref<5x4x8xbf16, #tpu.memory_space<vmem>>, %arg4: memref<1x8xf32, #tpu.memory_space<vmem>>, %arg5: memref<1x8xf32, #tpu.memory_space<vmem>>, %arg6: memref<1x256x8xf32, #tpu.memory_space<vmem>>) attributes {dimension_semantics = [#tpu.dimension_semantics<parallel>, #tpu.dimension_semantics<parallel>], iteration_bounds = array<i64: 2, 2>, scalar_prefetch = 0 : i64, scratch_operands = 0 : i64, tpu.core_type = #tpu.core_type<tc>, window_params = [{transform_indices = @transform_0, window_bounds = array<i64: 1, 576, 4>}, {pipeline_mode = #tpu.pipeline_mode<synchronous>, transform_indices = @transform_1, window_bounds = array<i64: 5, 4, 8>}, {pipeline_mode = #tpu.pipeline_mode<synchronous>, transform_indices = @transform_2, window_bounds = array<i64: 1, 8>}, {pipeline_mode = #tpu.pipeline_mode<synchronous>, transform_indices = @transform_3, window_bounds = array<i64: 1, 8>}, {transform_indices = @transform_4, window_bounds = array<i64: 1, 256, 8>}]} {
    %c256_i32 = arith.constant 256 : i32
    %0 = arith.muli %arg1, %c256_i32 : i32
    %cst = arith.constant 0.000000e+00 : f32
    %1 = vector.broadcast %cst : f32 to vector<256x8xf32>
    %c0_i32 = arith.constant 0 : i32
    %2 = arith.addi %0, %c0_i32 : i32
    %3 = tpu.assume_multiple %2, 16 : i32
    %c0 = arith.constant 0 : index
    %4 = arith.index_cast %3 : i32 to index
    %c0_0 = arith.constant 0 : index
    %5 = vector.load %arg2[%c0, %4, %c0_0] : memref<1x576x4xbf16, #tpu.memory_space<vmem>>, vector<1x256x4xbf16>
    %6 = vector.shape_cast %5 : vector<1x256x4xbf16> to vector<256x4xbf16>
    %c0_1 = arith.constant 0 : index
    %c0_2 = arith.constant 0 : index
    %c0_3 = arith.constant 0 : index
    %7 = vector.load %arg3[%c0_1, %c0_2, %c0_3] : memref<5x4x8xbf16, #tpu.memory_space<vmem>>, vector<1x4x8xbf16>
    %8 = vector.shape_cast %7 : vector<1x4x8xbf16> to vector<4x8xbf16>
    %cst_4 = arith.constant dense<0.000000e+00> : vector<256x8xf32>
    %9 = tpu.matmul %6, %8, %cst_4 {dimension_numbers = #tpu.dot_dimension_numbers<[1], [0], [0], [1], [0, 0, 1, 1], [], []>} : vector<256x4xbf16>, vector<4x8xbf16>, vector<256x8xf32> -> vector<256x8xf32>
    %10 = arith.addf %1, %9 : vector<256x8xf32>
    %c16_i32 = arith.constant 16 : i32
    %11 = arith.addi %0, %c16_i32 : i32
    %12 = tpu.assume_multiple %11, 16 : i32
    %c0_5 = arith.constant 0 : index
    %13 = arith.index_cast %12 : i32 to index
    %c0_6 = arith.constant 0 : index
    %14 = vector.load %arg2[%c0_5, %13, %c0_6] : memref<1x576x4xbf16, #tpu.memory_space<vmem>>, vector<1x256x4xbf16>
    %15 = vector.shape_cast %14 : vector<1x256x4xbf16> to vector<256x4xbf16>
    %c1 = arith.constant 1 : index
    %c0_7 = arith.constant 0 : index
    %c0_8 = arith.constant 0 : index
    %16 = vector.load %arg3[%c1, %c0_7, %c0_8] : memref<5x4x8xbf16, #tpu.memory_space<vmem>>, vector<1x4x8xbf16>
    %17 = vector.shape_cast %16 : vector<1x4x8xbf16> to vector<4x8xbf16>
    %cst_9 = arith.constant dense<0.000000e+00> : vector<256x8xf32>
    %18 = tpu.matmul %15, %17, %cst_9 {dimension_numbers = #tpu.dot_dimension_numbers<[1], [0], [0], [1], [0, 0, 1, 1], [], []>} : vector<256x4xbf16>, vector<4x8xbf16>, vector<256x8xf32> -> vector<256x8xf32>
    %19 = arith.addf %10, %18 : vector<256x8xf32>
    %c32_i32 = arith.constant 32 : i32
    %20 = arith.addi %0, %c32_i32 : i32
    %21 = tpu.assume_multiple %20, 16 : i32
    %c0_10 = arith.constant 0 : index
    %22 = arith.index_cast %21 : i32 to index
    %c0_11 = arith.constant 0 : index
    %23 = vector.load %arg2[%c0_10, %22, %c0_11] : memref<1x576x4xbf16, #tpu.memory_space<vmem>>, vector<1x256x4xbf16>
    %24 = vector.shape_cast %23 : vector<1x256x4xbf16> to vector<256x4xbf16>
    %c2 = arith.constant 2 : index
    %c0_12 = arith.constant 0 : index
    %c0_13 = arith.constant 0 : index
    %25 = vector.load %arg3[%c2, %c0_12, %c0_13] : memref<5x4x8xbf16, #tpu.memory_space<vmem>>, vector<1x4x8xbf16>
    %26 = vector.shape_cast %25 : vector<1x4x8xbf16> to vector<4x8xbf16>
    %cst_14 = arith.constant dense<0.000000e+00> : vector<256x8xf32>
    %27 = tpu.matmul %24, %26, %cst_14 {dimension_numbers = #tpu.dot_dimension_numbers<[1], [0], [0], [1], [0, 0, 1, 1], [], []>} : vector<256x4xbf16>, vector<4x8xbf16>, vector<256x8xf32> -> vector<256x8xf32>
    %28 = arith.addf %19, %27 : vector<256x8xf32>
    %c48_i32 = arith.constant 48 : i32
    %29 = arith.addi %0, %c48_i32 : i32
    %30 = tpu.assume_multiple %29, 16 : i32
    %c0_15 = arith.constant 0 : index
    %31 = arith.index_cast %30 : i32 to index
    %c0_16 = arith.constant 0 : index
    %32 = vector.load %arg2[%c0_15, %31, %c0_16] : memref<1x576x4xbf16, #tpu.memory_space<vmem>>, vector<1x256x4xbf16>
    %33 = vector.shape_cast %32 : vector<1x256x4xbf16> to vector<256x4xbf16>
    %c3 = arith.constant 3 : index
    %c0_17 = arith.constant 0 : index
    %c0_18 = arith.constant 0 : index
    %34 = vector.load %arg3[%c3, %c0_17, %c0_18] : memref<5x4x8xbf16, #tpu.memory_space<vmem>>, vector<1x4x8xbf16>
    %35 = vector.shape_cast %34 : vector<1x4x8xbf16> to vector<4x8xbf16>
    %cst_19 = arith.constant dense<0.000000e+00> : vector<256x8xf32>
    %36 = tpu.matmul %33, %35, %cst_19 {dimension_numbers = #tpu.dot_dimension_numbers<[1], [0], [0], [1], [0, 0, 1, 1], [], []>} : vector<256x4xbf16>, vector<4x8xbf16>, vector<256x8xf32> -> vector<256x8xf32>
    %37 = arith.addf %28, %36 : vector<256x8xf32>
    %c64_i32 = arith.constant 64 : i32
    %38 = arith.addi %0, %c64_i32 : i32
    %39 = tpu.assume_multiple %38, 16 : i32
    %c0_20 = arith.constant 0 : index
    %40 = arith.index_cast %39 : i32 to index
    %c0_21 = arith.constant 0 : index
    %41 = vector.load %arg2[%c0_20, %40, %c0_21] : memref<1x576x4xbf16, #tpu.memory_space<vmem>>, vector<1x256x4xbf16>
    %42 = vector.shape_cast %41 : vector<1x256x4xbf16> to vector<256x4xbf16>
    %c4 = arith.constant 4 : index
    %c0_22 = arith.constant 0 : index
    %c0_23 = arith.constant 0 : index
    %43 = vector.load %arg3[%c4, %c0_22, %c0_23] : memref<5x4x8xbf16, #tpu.memory_space<vmem>>, vector<1x4x8xbf16>
    %44 = vector.shape_cast %43 : vector<1x4x8xbf16> to vector<4x8xbf16>
    %cst_24 = arith.constant dense<0.000000e+00> : vector<256x8xf32>
    %45 = tpu.matmul %42, %44, %cst_24 {dimension_numbers = #tpu.dot_dimension_numbers<[1], [0], [0], [1], [0, 0, 1, 1], [], []>} : vector<256x4xbf16>, vector<4x8xbf16>, vector<256x8xf32> -> vector<256x8xf32>
    %46 = arith.addf %37, %45 : vector<256x8xf32>
    %c0_25 = arith.constant 0 : index
    %c0_26 = arith.constant 0 : index
    %47 = vector.load %arg4[%c0_25, %c0_26] : memref<1x8xf32, #tpu.memory_space<vmem>>, vector<1x8xf32>
    %48 = vector.shape_cast %47 : vector<1x8xf32> to vector<8xf32>
    %49 = vector.shape_cast %48 : vector<8xf32> to vector<1x8xf32>
    %50 = vector.broadcast %49 : vector<1x8xf32> to vector<256x8xf32>
    %51 = arith.mulf %46, %50 : vector<256x8xf32>
    %c0_27 = arith.constant 0 : index
    %c0_28 = arith.constant 0 : index
    %52 = vector.load %arg5[%c0_27, %c0_28] : memref<1x8xf32, #tpu.memory_space<vmem>>, vector<1x8xf32>
    %53 = vector.shape_cast %52 : vector<1x8xf32> to vector<8xf32>
    %54 = vector.shape_cast %53 : vector<8xf32> to vector<1x8xf32>
    %55 = vector.broadcast %54 : vector<1x8xf32> to vector<256x8xf32>
    %56 = arith.addf %51, %55 : vector<256x8xf32>
    %c0_29 = arith.constant 0 : index
    %c0_30 = arith.constant 0 : index
    %c0_31 = arith.constant 0 : index
    %57 = vector.load %arg6[%c0_29, %c0_30, %c0_31] : memref<1x256x8xf32, #tpu.memory_space<vmem>>, vector<1x256x8xf32>
    %58 = vector.shape_cast %57 : vector<1x256x8xf32> to vector<256x8xf32>
    %59 = vector.shape_cast %56 : vector<256x8xf32> to vector<1x256x8xf32>
    tpu.vector_store %arg6[%c0_29, %c0_30, %c0_31], %59 {strides = array<i32>} : memref<1x256x8xf32, #tpu.memory_space<vmem>>, vector<1x256x8xf32>,
    return
  }
  func.func @transform_0(%arg0: i32, %arg1: i32) -> (i32, i32, i32) {
    %c0_i32 = arith.constant 0 : i32
    %c0_i32_0 = arith.constant 0 : i32
    %c0_i32_1 = arith.constant 0 : i32
    return %arg0, %c0_i32, %c0_i32_0 : i32, i32, i32
  }
  func.func @transform_1(%arg0: i32, %arg1: i32) -> (i32, i32, i32) {
    %c0_i32 = arith.constant 0 : i32
    %c0_i32_0 = arith.constant 0 : i32
    %c0_i32_1 = arith.constant 0 : i32
    %c0_i32_2 = arith.constant 0 : i32
    return %c0_i32, %c0_i32_0, %c0_i32_1 : i32, i32, i32
  }
  func.func @transform_2(%arg0: i32, %arg1: i32) -> (i32, i32) {
    %c0_i32 = arith.constant 0 : i32
    %c0_i32_0 = arith.constant 0 : i32
    %c0_i32_1 = arith.constant 0 : i32
    return %c0_i32, %c0_i32_0 : i32, i32
  }
  func.func @transform_3(%arg0: i32, %arg1: i32) -> (i32, i32) {
    %c0_i32 = arith.constant 0 : i32
    %c0_i32_0 = arith.constant 0 : i32
    %c0_i32_1 = arith.constant 0 : i32
    return %c0_i32, %c0_i32_0 : i32, i32
  }
  func.func @transform_4(%arg0: i32, %arg1: i32) -> (i32, i32, i32) {
    %c0_i32 = arith.constant 0 : i32
    %c0_i32_0 = arith.constant 0 : i32
    return %arg0, %arg1, %c0_i32 : i32, i32, i32
  }
}

</mosaic_0001>

<llo_original>
// kernel: tpu_custom_call.1
$region0: #{tpu_custom_call.1}
  #allocation0 [shape = 'u32[]', space=smem, size = 0x4, offset = 0x4, fixed_abs, tag = 'smem constant byte address 0x4 - core index']
  #allocation1 [shape = 'u32[144,128]{1,0:T(1,128)}', space=vmem, size = 0x12000, scoped, tag = 'internal scratch']
  %s0 = inlined_call_operand.vmem [shape: bf16[2,576,4], index: 0, kind: input, shape index: {}]
  %s1 = inlined_call_operand.vmem [shape: bf16[5,4,8], index: 1, kind: input, shape index: {}]
  %s2 = inlined_call_operand.vmem [shape: f32[1,8], index: 2, kind: input, shape index: {}]
  %s3 = inlined_call_operand.vmem [shape: f32[1,8], index: 3, kind: input, shape index: {}]
  %s4 = inlined_call_operand.vmem [shape: f32[2,512,8], index: 4, kind: output, shape index: {}]
  %s5 = sld [smem:[#allocation0]]
  $region49: #{tpu_custom_call.1} parent=0
    _
  %s7 = ssub.s32 1, %s5
  %s8 = scalar_select 0, %s7, %s5
  loop: start=0, step=1, limit=6
  $region2: #{tpu_custom_call.1} parent=0 // loop_pre_header
    _
  $region3: #{tpu_custom_call.1} parent=0 // loop_header
    %s10 = sphi 0, %s14
    %p11 = scmp.ge.s32.totalorder %s10, 6
    %s17 = sphi 0, %s29
    %s18 = sphi 0, %s25
    %s19 = sphi 0, %s17
    %s20 = sphi 0, %s18
    %s21 = sphi 0, %s19
    %s22 = sphi 0, %s20
    %s32 = sphi 0, %s34
    %s35 = sphi 0, %s32
    %s36 = sphi 0, %s35
    %s52 = sphi 0, %s36
    %s56 = sphi 0, %s56
    %s58 = sphi 0, %s56
    %s59 = sphi 0, %s58
    %s73 = sphi 0, %s59
    %s77 = sphi 0, %s77
    %s79 = sphi 0, %s77
    %s80 = sphi 0, %s79
    %s94 = sphi 0, %s80
    %s98 = sphi 0, %s98
    %s100 = sphi 0, %s98
    %s101 = sphi 0, %s100
    %s115 = sphi 0, %s101
    %s123 = sphi 0, %s125
    %s126 = sphi 0, %s123
    %s127 = sphi 0, %s126
    %s143 = sphi 0, %s127
  $region4: #{tpu_custom_call.1} parent=0 // loop_header_branch
    %13 = sbr.rel (%p11) target = $region8
  $region5: #{tpu_custom_call.1} parent=0 // loop_body
    %s15 = ssub.s32 %s10, 1
    %s16 = ssub.s32 %s10, 2
    %s23 = sadd.s32 1, %s18
    %p24 = scmp.ge.s32.totalorder %s23, 2
    %s25 = scalar_select %p24, 0, %s23
    %s26 = sadd.s32 1, %s17
    %s27 = scalar_select %p24, %s26, %s17
    %p28 = scmp.ge.s32.totalorder %s27, 2
    %s29 = scalar_select %p28, 0, %s27
    %s30 = ssub.s32 %s17, %s29
    %p31 = scmp.eq.s32.totalorder %s30, 0
    %s33 = sadd.s32 %s32, 1
    %s34 = scalar_select %p31, %s32, %s33
    %p37 = pneg %p31
    %p38 = scmp.eq.s32.totalorder %s10, 3
    %p39 = por %p37, %p38
    %p40 = scmp.ne.s32.totalorder %s32, %s35
    %p41 = scmp.eq.s32.totalorder %s10, 0
    %p42 = por %p40, %p41
    %p43 = scmp.ne.s32.totalorder %s32, %s35
    %p44 = scmp.eq.s32.totalorder %s15, 3
    %p45 = por %p43, %p44
    %p46 = scmp.ne.s32.totalorder %s35, %s36
    %p47 = scmp.eq.s32.totalorder %s15, 0
    %p48 = por %p46, %p47
    %p49 = scmp.ne.s32.totalorder %s35, %s36
    %p50 = scmp.eq.s32.totalorder %s16, 3
    %p51 = por %p49, %p50
    %p53 = scmp.ne.s32.totalorder %s36, %s52
    %p54 = scmp.eq.s32.totalorder %s16, 0
    %p55 = por %p53, %p54
    %s57 = sadd.s32 %s56, 1
    %p60 = scmp.eq.s32.totalorder %s10, 3
    %p61 = scmp.ne.s32.totalorder %s56, %s58
    %p62 = scmp.eq.s32.totalorder %s10, 0
    %p63 = por %p61, %p62
    %p64 = scmp.ne.s32.totalorder %s56, %s58
    %p65 = scmp.eq.s32.totalorder %s15, 3
    %p66 = por %p64, %p65
    %p67 = scmp.ne.s32.totalorder %s58, %s59
    %p68 = scmp.eq.s32.totalorder %s15, 0
    %p69 = por %p67, %p68
    %p70 = scmp.ne.s32.totalorder %s58, %s59
    %p71 = scmp.eq.s32.totalorder %s16, 3
    %p72 = por %p70, %p71
    %p74 = scmp.ne.s32.totalorder %s59, %s73
    %p75 = scmp.eq.s32.totalorder %s16, 0
    %p76 = por %p74, %p75
    %s78 = sadd.s32 %s77, 1
    %p81 = scmp.eq.s32.totalorder %s10, 3
    %p82 = scmp.ne.s32.totalorder %s77, %s79
    %p83 = scmp.eq.s32.totalorder %s10, 0
    %p84 = por %p82, %p83
    %p85 = scmp.ne.s32.totalorder %s77, %s79
    %p86 = scmp.eq.s32.totalorder %s15, 3
    %p87 = por %p85, %p86
    %p88 = scmp.ne.s32.totalorder %s79, %s80
    %p89 = scmp.eq.s32.totalorder %s15, 0
    %p90 = por %p88, %p89
    %p91 = scmp.ne.s32.totalorder %s79, %s80
    %p92 = scmp.eq.s32.totalorder %s16, 3
    %p93 = por %p91, %p92
    %p95 = scmp.ne.s32.totalorder %s80, %s94
    %p96 = scmp.eq.s32.totalorder %s16, 0
    %p97 = por %p95, %p96
    %s99 = sadd.s32 %s98, 1
    %p102 = scmp.eq.s32.totalorder %s10, 3
    %p103 = scmp.ne.s32.totalorder %s98, %s100
    %p104 = scmp.eq.s32.totalorder %s10, 0
    %p105 = por %p103, %p104
    %p106 = scmp.ne.s32.totalorder %s98, %s100
    %p107 = scmp.eq.s32.totalorder %s15, 3
    %p108 = por %p106, %p107
    %p109 = scmp.ne.s32.totalorder %s100, %s101
    %p110 = scmp.eq.s32.totalorder %s15, 0
    %p111 = por %p109, %p110
    %p112 = scmp.ne.s32.totalorder %s100, %s101
    %p113 = scmp.eq.s32.totalorder %s16, 3
    %p114 = por %p112, %p113
    %p116 = scmp.ne.s32.totalorder %s101, %s115
    %p117 = scmp.eq.s32.totalorder %s16, 0
    %p118 = por %p116, %p117
    %s119 = ssub.s32 %s17, %s29
    %s120 = ssub.s32 %s18, %s25
    %s121 = sor.u32 %s119, %s120
    %p122 = scmp.eq.s32.totalorder %s121, 0
    %s124 = sadd.s32 %s123, 1
    %s125 = scalar_select %p122, %s123, %s124
    %p128 = pneg %p122
    %p129 = scmp.eq.s32.totalorder %s10, 3
    %p130 = por %p128, %p129
    %p131 = scmp.ne.s32.totalorder %s123, %s126
    %p132 = scmp.eq.s32.totalorder %s10, 0
    %p133 = por %p131, %p132
    %p134 = scmp.ne.s32.totalorder %s123, %s126
    %p135 = scmp.eq.s32.totalorder %s15, 3
    %p136 = por %p134, %p135
    %p137 = scmp.ne.s32.totalorder %s126, %s127
    %p138 = scmp.eq.s32.totalorder %s15, 0
    %p139 = por %p137, %p138
    %p140 = scmp.ne.s32.totalorder %s126, %s127
    %p141 = scmp.eq.s32.totalorder %s16, 3
    %p142 = por %p140, %p141
    %p144 = scmp.ne.s32.totalorder %s127, %s143
    %p145 = scmp.eq.s32.totalorder %s16, 0
    %p146 = por %p144, %p145
    %p147 = scmp.le.s32.totalorder 1, %s10
    %p148 = scmp.lt.s32.totalorder %s10, 5
    %p149 = pnand %p147, %p148
    %p150 = pneg %p149
    // Predicated region
    $region9: #{tpu_custom_call.1} parent=5 // pred_check
      _
    $region10: #{tpu_custom_call.1} parent=5 // pred_check_branch
      %152 = sbr.rel (%p149) target = $region12
    $region11: #{tpu_custom_call.1} parent=5 // pred_region
      %s153 = ssub.s32 %s10, 1
      // Predicated region
      $region13: #{tpu_custom_call.1} parent=11 // pred_check
        %p154 = pneg %p69
      $region14: #{tpu_custom_call.1} parent=11 // pred_check_branch
        %156 = sbr.rel (%p154) target = $region16
      $region15: #{tpu_custom_call.1} parent=11 // pred_region
        _
      $region16: #{tpu_custom_call.1} parent=11 // pred_fallthru
        _
      // Predicated region
      $region17: #{tpu_custom_call.1} parent=11 // pred_check
        %p157 = pneg %p90
      $region18: #{tpu_custom_call.1} parent=11 // pred_check_branch
        %159 = sbr.rel (%p157) target = $region20
      $region19: #{tpu_custom_call.1} parent=11 // pred_region
        _
      $region20: #{tpu_custom_call.1} parent=11 // pred_fallthru
        _
      // Predicated region
      $region21: #{tpu_custom_call.1} parent=11 // pred_check
        %p160 = pneg %p111
      $region22: #{tpu_custom_call.1} parent=11 // pred_check_branch
        %162 = sbr.rel (%p160) target = $region24
      $region23: #{tpu_custom_call.1} parent=11 // pred_region
        _
      $region24: #{tpu_custom_call.1} parent=11 // pred_fallthru
        _
    $region12: #{tpu_custom_call.1} parent=5 // pred_fallthru
      _
    %p163 = scmp.lt.s32.totalorder %s10, 4
    // Predicated region
    $region25: #{tpu_custom_call.1} parent=5 // pred_check
      %p164 = pneg %p163
    $region26: #{tpu_custom_call.1} parent=5 // pred_check_branch
      %166 = sbr.rel (%p164) target = $region28
    $region27: #{tpu_custom_call.1} parent=5 // pred_region
      // Predicated region
      $region29: #{tpu_custom_call.1} parent=27 // pred_check
        %p167 = pneg %p42
      $region30: #{tpu_custom_call.1} parent=27 // pred_check_branch
        %169 = sbr.rel (%p167) target = $region32
      $region31: #{tpu_custom_call.1} parent=27 // pred_region
        %p170 = scmp.lt.s32.totalorder %s17, 1
        %s171 = scalar_select %p170, %s17, 1
        %s172 = smul.addr %s171, 72
        %s173 = smul.addr %s172, 4
        %s174 = scalar_lea.vmem %s0, %s173
      $region32: #{tpu_custom_call.1} parent=27 // pred_fallthru
        _
    $region28: #{tpu_custom_call.1} parent=5 // pred_fallthru
      _
    %p175 = scmp.le.s32.totalorder 1, %s10
    %p176 = scmp.lt.s32.totalorder %s10, 5
    %p177 = pnand %p175, %p176
    %p178 = pneg %p177
    // Predicated region
    $region33: #{tpu_custom_call.1} parent=5 // pred_check
      _
    $region34: #{tpu_custom_call.1} parent=5 // pred_check_branch
      %180 = sbr.rel (%p177) target = $region36
    $region35: #{tpu_custom_call.1} parent=5 // pred_region
      %s181 = ssub.s32 %s10, 1
      %p182 = scmp.lt.s32.totalorder %s19, 1
      %s183 = scalar_select %p182, %s19, 1
      %s184 = smul.addr %s183, 72
      %s185 = smul.addr %s184, 4
      %s186 = scalar_lea.vmem %s0, %s185
      %p187 = pneg %p48
      %p188 = pneg %p45
      %p189 = pneg %p69
      %p190 = pneg %p66
      %p191 = pneg %p90
      %p192 = pneg %p87
      %p193 = pneg %p111
      %p194 = pneg %p108
      %p195 = pneg %p139
      %p196 = pneg %p136
      %s197 = smul.u32 32, %s20
      %p198 = scmp.lt.s32.totalorder %s19, 1
      %s199 = scalar_select %p198, %s19, 1
      %p200 = scmp.lt.s32.totalorder %s197, 63
      %s201 = scalar_select %p200, %s197, 63
      %s202 = smul.addr %s199, 64
      %s203 = sadd.s32 %s201, %s202
      %s204 = smul.addr %s203, 8
      %s205 = scalar_lea.vmem %s4, %s204
      %p206 = scmp.lt.s32.totalorder %s19, 1
      %s207 = scalar_select %p206, %s19, 1
      %s208 = smul.addr %s207, 72
      %s209 = smul.addr %s208, 4
      %s210 = scalar_lea.vmem %s0, %s209
      %s211 = smul.u32 32, %s20
      %p212 = scmp.lt.s32.totalorder %s19, 1
      %s213 = scalar_select %p212, %s19, 1
      %p214 = scmp.lt.s32.totalorder %s211, 63
      %s215 = scalar_select %p214, %s211, 63
      %s216 = smul.addr %s213, 64
      %s217 = sadd.s32 %s215, %s216
      %s218 = smul.addr %s217, 8
      %s219 = scalar_lea.vmem %s4, %s218
      %s220 = smul.u32 32, %s20
      %s222 = smul.u32 %s20, 256
      %s223 = sshra.s32 %s222, 3
      %s224 = sand.u32 %s222, 7
      %s225 = smul.addr %s223, 4
      %s226 = scalar_lea.vmem %s210, %s225
      %v227 = vld [vmem:[%s226] sm:$0xf]
      %v228 = vld [vmem:[%s226 + $0x4] sm:$0xf]
      %v229 = vld [vmem:[%s226 + $0x8] sm:$0xf]
      %v230 = vld [vmem:[%s226 + $0xc] sm:$0xf]
      %v231 = vld [vmem:[%s226 + $0x10] sm:$0xf]
      %v232 = vld [vmem:[%s226 + $0x14] sm:$0xf]
      %v233 = vld [vmem:[%s226 + $0x18] sm:$0xf]
      %v234 = vld [vmem:[%s226 + $0x1c] sm:$0xf]
      %v235 = vld [vmem:[%s226 + $0x20] sm:$0xf]
      %v236 = vld [vmem:[%s226 + $0x24] sm:$0xf]
      %v237 = vld [vmem:[%s226 + $0x28] sm:$0xf]
      %v238 = vld [vmem:[%s226 + $0x2c] sm:$0xf]
      %v239 = vld [vmem:[%s226 + $0x30] sm:$0xf]
      %v240 = vld [vmem:[%s226 + $0x34] sm:$0xf]
      %v241 = vld [vmem:[%s226 + $0x38] sm:$0xf]
      %v242 = vld [vmem:[%s226 + $0x3c] sm:$0xf]
      %v243 = vld [vmem:[%s226 + $0x40] sm:$0xf]
      %v244 = vld [vmem:[%s226 + $0x44] sm:$0xf]
      %v245 = vld [vmem:[%s226 + $0x48] sm:$0xf]
      %v246 = vld [vmem:[%s226 + $0x4c] sm:$0xf]
      %v247 = vld [vmem:[%s226 + $0x50] sm:$0xf]
      %v248 = vld [vmem:[%s226 + $0x54] sm:$0xf]
      %v249 = vld [vmem:[%s226 + $0x58] sm:$0xf]
      %v250 = vld [vmem:[%s226 + $0x5c] sm:$0xf]
      %v251 = vld [vmem:[%s226 + $0x60] sm:$0xf]
      %v252 = vld [vmem:[%s226 + $0x64] sm:$0xf]
      %v253 = vld [vmem:[%s226 + $0x68] sm:$0xf]
      %v254 = vld [vmem:[%s226 + $0x6c] sm:$0xf]
      %v255 = vld [vmem:[%s226 + $0x70] sm:$0xf]
      %v256 = vld [vmem:[%s226 + $0x74] sm:$0xf]
      %v257 = vld [vmem:[%s226 + $0x78] sm:$0xf]
      %v258 = vld [vmem:[%s226 + $0x7c] sm:$0xf]
      %v259 = vld [vmem:[%s1] sm:$0x3]
      %s260 = sadd.s32 %s222, 16
      %s261 = sshra.s32 %s260, 3
      %s262 = sand.u32 %s260, 7
      %s263 = smul.addr %s261, 4
      %s264 = scalar_lea.vmem %s210, %s263
      %v265 = vld [vmem:[%s264] sm:$0xf]
      %v266 = vld [vmem:[%s264 + $0x4] sm:$0xf]
      %v267 = vld [vmem:[%s264 + $0x8] sm:$0xf]
      %v268 = vld [vmem:[%s264 + $0xc] sm:$0xf]
      %v269 = vld [vmem:[%s264 + $0x10] sm:$0xf]
      %v270 = vld [vmem:[%s264 + $0x14] sm:$0xf]
      %v271 = vld [vmem:[%s264 + $0x18] sm:$0xf]
      %v272 = vld [vmem:[%s264 + $0x1c] sm:$0xf]
      %v273 = vld [vmem:[%s264 + $0x20] sm:$0xf]
      %v274 = vld [vmem:[%s264 + $0x24] sm:$0xf]
      %v275 = vld [vmem:[%s264 + $0x28] sm:$0xf]
      %v276 = vld [vmem:[%s264 + $0x2c] sm:$0xf]
      %v277 = vld [vmem:[%s264 + $0x30] sm:$0xf]
      %v278 = vld [vmem:[%s264 + $0x34] sm:$0xf]
      %v279 = vld [vmem:[%s264 + $0x38] sm:$0xf]
      %v280 = vld [vmem:[%s264 + $0x3c] sm:$0xf]
      %v281 = vld [vmem:[%s264 + $0x40] sm:$0xf]
      %v282 = vld [vmem:[%s264 + $0x44] sm:$0xf]
      %v283 = vld [vmem:[%s264 + $0x48] sm:$0xf]
      %v284 = vld [vmem:[%s264 + $0x4c] sm:$0xf]
      %v285 = vld [vmem:[%s264 + $0x50] sm:$0xf]
      %v286 = vld [vmem:[%s264 + $0x54] sm:$0xf]
      %v287 = vld [vmem:[%s264 + $0x58] sm:$0xf]
      %v288 = vld [vmem:[%s264 + $0x5c] sm:$0xf]
      %v289 = vld [vmem:[%s264 + $0x60] sm:$0xf]
      %v290 = vld [vmem:[%s264 + $0x64] sm:$0xf]
      %v291 = vld [vmem:[%s264 + $0x68] sm:$0xf]
      %v292 = vld [vmem:[%s264 + $0x6c] sm:$0xf]
      %v293 = vld [vmem:[%s264 + $0x70] sm:$0xf]
      %v294 = vld [vmem:[%s264 + $0x74] sm:$0xf]
      %v295 = vld [vmem:[%s264 + $0x78] sm:$0xf]
      %v296 = vld [vmem:[%s264 + $0x7c] sm:$0xf]
      %s297 = scalar_lea.vmem %s1, 2
      %v298 = vld [vmem:[%s297] sm:$0x3]
      %v331 = vunpack.c.l.b16 %v265
      %v332 = vunpack.c.l.b16 %v266
      %v333 = vunpack.c.l.b16 %v267
      %v334 = vunpack.c.l.b16 %v268
      %v335 = vunpack.c.l.b16 %v269
      %v336 = vunpack.c.l.b16 %v270
      %v337 = vunpack.c.l.b16 %v271
      %v338 = vunpack.c.l.b16 %v272
      %v339 = vunpack.c.l.b16 %v273
      %v340 = vunpack.c.l.b16 %v274
      %v341 = vunpack.c.l.b16 %v275
      %v342 = vunpack.c.l.b16 %v276
      %v343 = vunpack.c.l.b16 %v277
      %v344 = vunpack.c.l.b16 %v278
      %v345 = vunpack.c.l.b16 %v279
      %v346 = vunpack.c.l.b16 %v280
      %v347 = vunpack.c.l.b16 %v281
      %v348 = vunpack.c.l.b16 %v282
      %v349 = vunpack.c.l.b16 %v283
      %v350 = vunpack.c.l.b16 %v284
      %v351 = vunpack.c.l.b16 %v285
      %v352 = vunpack.c.l.b16 %v286
      %v353 = vunpack.c.l.b16 %v287
      %v354 = vunpack.c.l.b16 %v288
      %v355 = vunpack.c.l.b16 %v289
      %v356 = vunpack.c.l.b16 %v290
      %v357 = vunpack.c.l.b16 %v291
      %v358 = vunpack.c.l.b16 %v292
      %v359 = vunpack.c.l.b16 %v293
      %v360 = vunpack.c.l.b16 %v294
      %v361 = vunpack.c.l.b16 %v295
      %v362 = vunpack.c.l.b16 %v296
      %v363 = vpack.c.b16 %v332, %v331
      %v364 = vpack.c.b16 %v334, %v333
      %v365 = vpack.c.b16 %v336, %v335
      %v366 = vpack.c.b16 %v338, %v337
      %v367 = vpack.c.b16 %v340, %v339
      %v368 = vpack.c.b16 %v342, %v341
      %v369 = vpack.c.b16 %v344, %v343
      %v370 = vpack.c.b16 %v346, %v345
      %v371 = vpack.c.b16 %v348, %v347
      %v372 = vpack.c.b16 %v350, %v349
      %v373 = vpack.c.b16 %v352, %v351
      %v374 = vpack.c.b16 %v354, %v353
      %v375 = vpack.c.b16 %v356, %v355
      %v376 = vpack.c.b16 %v358, %v357
      %v377 = vpack.c.b16 %v360, %v359
      %v378 = vpack.c.b16 %v362, %v361
      %vm379 = vcmask 31744
      %v381 = vsel %vm379, %v363, 0
      %v384 = vsel %vm379, %v364, 0
      %v387 = vsel %vm379, %v365, 0
      %v390 = vsel %vm379, %v366, 0
      %v393 = vsel %vm379, %v367, 0
      %v396 = vsel %vm379, %v368, 0
      %v399 = vsel %vm379, %v369, 0
      %v402 = vsel %vm379, %v370, 0
      %v405 = vsel %vm379, %v371, 0
      %v408 = vsel %vm379, %v372, 0
      %v411 = vsel %vm379, %v373, 0
      %v414 = vsel %vm379, %v374, 0
      %v417 = vsel %vm379, %v375, 0
      %v420 = vsel %vm379, %v376, 0
      %v423 = vsel %vm379, %v377, 0
      %v426 = vsel %vm379, %v378, 0
      %vm428 = vcmask 1041408
      %v430 = vsel %vm428, %v298, 0
      %432 = vmatprep.subr.bf16.mxu0 0
      %433 = vmatpush1.bf16.msra.mxu0 %v430
      %434 = vmatprep.subr.bf16.mxu0 0
      %435 = vmatpush1.bf16.msra.mxu0 0
      %436 = vmatprep.subr.bf16.mxu0 0
      %437 = vmatpush1.bf16.msra.mxu0 0
      %438 = vmatprep.subr.bf16.mxu0 0
      %439 = vmatpush1.bf16.msra.mxu0 0
      %440 = vmatprep.subr.bf16.mxu0 0
      %441 = vmatpush1.bf16.msra.mxu0 0
      %442 = vmatprep.subr.bf16.mxu0 0
      %443 = vmatpush1.bf16.msra.mxu0 0
      %444 = vmatprep.subr.bf16.mxu0 0
      %445 = vmatpush1.bf16.msra.mxu0 0
      %446 = vmatprep.subr.bf16.mxu0 0
      %447 = vmatpush1.bf16.msra.mxu0 0
      %448 = vmatprep.subr.bf16.mxu0 0
      %449 = vmatpush1.bf16.msra.mxu0 0
      %450 = vmatprep.subr.bf16.mxu0 0
      %451 = vmatpush1.bf16.msra.mxu0 0
      %452 = vmatprep.subr.bf16.mxu0 0
      %453 = vmatpush1.bf16.msra.mxu0 0
      %454 = vmatprep.subr.bf16.mxu0 0
      %455 = vmatpush1.bf16.msra.mxu0 0
      %456 = vmatprep.subr.bf16.mxu0 0
      %457 = vmatpush1.bf16.msra.mxu0 0
      %458 = vmatprep.subr.bf16.mxu0 0
      %459 = vmatpush1.bf16.msra.mxu0 0
      %460 = vmatprep.subr.bf16.mxu0 0
      %461 = vmatpush1.bf16.msra.mxu0 0
      %462 = vmatprep.subr.bf16.mxu0 0
      %463 = vmatpush1.bf16.msra.mxu0 0
      %464 = vmatprep.mubr.bf16.mxu0 0
      %465 = vmatmul.mubr.bf16.gmra.mrb[0].mxu0 %v381
      %v466 = vpop.f32.mrb[0].mxu0
      %v467 = vadd.f32 0.0, %v466
      %v468 = vpop.f32.mrb[0].mxu0
      %v469 = vpop.f32.mrb[0].mxu0
      %v470 = vadd.f32 0.0, %v469
      %v471 = vpop.f32.mrb[0].mxu0
      %472 = vmatprep.mubr.bf16.mxu0 0
      %473 = vmatmul.mubr.bf16.gmra.mrb[0].mxu0 %v384
      %v474 = vpop.f32.mrb[0].mxu0
      %v475 = vadd.f32 0.0, %v474
      %v476 = vpop.f32.mrb[0].mxu0
      %v477 = vpop.f32.mrb[0].mxu0
      %v478 = vadd.f32 0.0, %v477
      %v479 = vpop.f32.mrb[0].mxu0
      %480 = vmatprep.mubr.bf16.mxu0 0
      %481 = vmatmul.mubr.bf16.gmra.mrb[0].mxu0 %v387
      %v482 = vpop.f32.mrb[0].mxu0
      %v483 = vadd.f32 0.0, %v482
      %v484 = vpop.f32.mrb[0].mxu0
      %v485 = vpop.f32.mrb[0].mxu0
      %v486 = vadd.f32 0.0, %v485
      %v487 = vpop.f32.mrb[0].mxu0
      %488 = vmatprep.mubr.bf16.mxu0 0
      %489 = vmatmul.mubr.bf16.gmra.mrb[0].mxu0 %v390
      %v490 = vpop.f32.mrb[0].mxu0
      %v491 = vadd.f32 0.0, %v490
      %v492 = vpop.f32.mrb[0].mxu0
      %v493 = vpop.f32.mrb[0].mxu0
      %v494 = vadd.f32 0.0, %v493
      %v495 = vpop.f32.mrb[0].mxu0
      %496 = vmatprep.mubr.bf16.mxu0 0
      %497 = vmatmul.mubr.bf16.gmra.mrb[0].mxu0 %v393
      %v498 = vpop.f32.mrb[0].mxu0
      %v499 = vadd.f32 0.0, %v498
      %v500 = vpop.f32.mrb[0].mxu0
      %v501 = vpop.f32.mrb[0].mxu0
      %v502 = vadd.f32 0.0, %v501
      %v503 = vpop.f32.mrb[0].mxu0
      %504 = vmatprep.mubr.bf16.mxu0 0
      %505 = vmatmul.mubr.bf16.gmra.mrb[0].mxu0 %v396
      %v506 = vpop.f32.mrb[0].mxu0
      %v507 = vadd.f32 0.0, %v506
      %v508 = vpop.f32.mrb[0].mxu0
      %v509 = vpop.f32.mrb[0].mxu0
      %v510 = vadd.f32 0.0, %v509
      %v511 = vpop.f32.mrb[0].mxu0
      %512 = vmatprep.mubr.bf16.mxu0 0
      %513 = vmatmul.mubr.bf16.gmra.mrb[0].mxu0 %v399
      %v514 = vpop.f32.mrb[0].mxu0
      %v515 = vadd.f32 0.0, %v514
      %v516 = vpop.f32.mrb[0].mxu0
      %v517 = vpop.f32.mrb[0].mxu0
      %v518 = vadd.f32 0.0, %v517
      %v519 = vpop.f32.mrb[0].mxu0
      %520 = vmatprep.mubr.bf16.mxu0 0
      %521 = vmatmul.mubr.bf16.gmra.mrb[0].mxu0 %v402
      %v522 = vpop.f32.mrb[0].mxu0
      %v523 = vadd.f32 0.0, %v522
      %v524 = vpop.f32.mrb[0].mxu0
      %v525 = vpop.f32.mrb[0].mxu0
      %v526 = vadd.f32 0.0, %v525
      %v527 = vpop.f32.mrb[0].mxu0
      %528 = vmatprep.mubr.bf16.mxu0 0
      %529 = vmatmul.mubr.bf16.gmra.mrb[0].mxu0 %v405
      %v530 = vpop.f32.mrb[0].mxu0
      %v531 = vadd.f32 0.0, %v530
      %v532 = vpop.f32.mrb[0].mxu0
      %v533 = vpop.f32.mrb[0].mxu0
      %v534 = vadd.f32 0.0, %v533
      %v535 = vpop.f32.mrb[0].mxu0
      %536 = vmatprep.mubr.bf16.mxu0 0
      %537 = vmatmul.mubr.bf16.gmra.mrb[0].mxu0 %v408
      %v538 = vpop.f32.mrb[0].mxu0
      %v539 = vadd.f32 0.0, %v538
      %v540 = vpop.f32.mrb[0].mxu0
      %v541 = vpop.f32.mrb[0].mxu0
      %v542 = vadd.f32 0.0, %v541
      %v543 = vpop.f32.mrb[0].mxu0
      %544 = vmatprep.mubr.bf16.mxu0 0
      %545 = vmatmul.mubr.bf16.gmra.mrb[0].mxu0 %v411
      %v546 = vpop.f32.mrb[0].mxu0
      %v547 = vadd.f32 0.0, %v546
      %v548 = vpop.f32.mrb[0].mxu0
      %v549 = vpop.f32.mrb[0].mxu0
      %v550 = vadd.f32 0.0, %v549
      %v551 = vpop.f32.mrb[0].mxu0
      %552 = vmatprep.mubr.bf16.mxu0 0
      %553 = vmatmul.mubr.bf16.gmra.mrb[0].mxu0 %v414
      %v554 = vpop.f32.mrb[0].mxu0
      %v555 = vadd.f32 0.0, %v554
      %v556 = vpop.f32.mrb[0].mxu0
      %v557 = vpop.f32.mrb[0].mxu0
      %v558 = vadd.f32 0.0, %v557
      %v559 = vpop.f32.mrb[0].mxu0
      %560 = vmatprep.mubr.bf16.mxu0 0
      %561 = vmatmul.mubr.bf16.gmra.mrb[0].mxu0 %v417
      %v562 = vpop.f32.mrb[0].mxu0
      %v563 = vadd.f32 0.0, %v562
      %v564 = vpop.f32.mrb[0].mxu0
      %v565 = vpop.f32.mrb[0].mxu0
      %v566 = vadd.f32 0.0, %v565
      %v567 = vpop.f32.mrb[0].mxu0
      %568 = vmatprep.mubr.bf16.mxu0 0
      %569 = vmatmul.mubr.bf16.gmra.mrb[0].mxu0 %v420
      %v570 = vpop.f32.mrb[0].mxu0
      %v571 = vadd.f32 0.0, %v570
      %v572 = vpop.f32.mrb[0].mxu0
      %v573 = vpop.f32.mrb[0].mxu0
      %v574 = vadd.f32 0.0, %v573
      %v575 = vpop.f32.mrb[0].mxu0
      %576 = vmatprep.mubr.bf16.mxu0 0
      %577 = vmatmul.mubr.bf16.gmra.mrb[0].mxu0 %v423
      %v578 = vpop.f32.mrb[0].mxu0
      %v579 = vadd.f32 0.0, %v578
      %v580 = vpop.f32.mrb[0].mxu0
      %v581 = vpop.f32.mrb[0].mxu0
      %v582 = vadd.f32 0.0, %v581
      %v583 = vpop.f32.mrb[0].mxu0
      %584 = vmatprep.mubr.bf16.mxu0 0
      %585 = vmatmul.mubr.bf16.gmra.mrb[0].mxu0 %v426
      %v586 = vpop.f32.mrb[0].mxu0
      %v587 = vadd.f32 0.0, %v586
      %v588 = vpop.f32.mrb[0].mxu0
      %v589 = vpop.f32.mrb[0].mxu0
      %v590 = vadd.f32 0.0, %v589
      %v591 = vpop.f32.mrb[0].mxu0
      %592 = vdwg.mxu0
      %v625 = vunpack.c.l.b16 %v227
      %v626 = vunpack.c.l.b16 %v228
      %v627 = vunpack.c.l.b16 %v229
      %v628 = vunpack.c.l.b16 %v230
      %v629 = vunpack.c.l.b16 %v231
      %v630 = vunpack.c.l.b16 %v232
      %v631 = vunpack.c.l.b16 %v233
      %v632 = vunpack.c.l.b16 %v234
      %v633 = vunpack.c.l.b16 %v235
      %v634 = vunpack.c.l.b16 %v236
      %v635 = vunpack.c.l.b16 %v237
      %v636 = vunpack.c.l.b16 %v238
      %v637 = vunpack.c.l.b16 %v239
      %v638 = vunpack.c.l.b16 %v240
      %v639 = vunpack.c.l.b16 %v241
      %v640 = vunpack.c.l.b16 %v242
      %v641 = vunpack.c.l.b16 %v243
      %v642 = vunpack.c.l.b16 %v244
      %v643 = vunpack.c.l.b16 %v245
      %v644 = vunpack.c.l.b16 %v246
      %v645 = vunpack.c.l.b16 %v247
      %v646 = vunpack.c.l.b16 %v248
      %v647 = vunpack.c.l.b16 %v249
      %v648 = vunpack.c.l.b16 %v250
      %v649 = vunpack.c.l.b16 %v251
      %v650 = vunpack.c.l.b16 %v252
      %v651 = vunpack.c.l.b16 %v253
      %v652 = vunpack.c.l.b16 %v254
      %v653 = vunpack.c.l.b16 %v255
      %v654 = vunpack.c.l.b16 %v256
      %v655 = vunpack.c.l.b16 %v257
      %v656 = vunpack.c.l.b16 %v258
      %v657 = vpack.c.b16 %v626, %v625
      %v658 = vpack.c.b16 %v628, %v627
      %v659 = vpack.c.b16 %v630, %v629
      %v660 = vpack.c.b16 %v632, %v631
      %v661 = vpack.c.b16 %v634, %v633
      %v662 = vpack.c.b16 %v636, %v635
      %v663 = vpack.c.b16 %v638, %v637
      %v664 = vpack.c.b16 %v640, %v639
      %v665 = vpack.c.b16 %v642, %v641
      %v666 = vpack.c.b16 %v644, %v643
      %v667 = vpack.c.b16 %v646, %v645
      %v668 = vpack.c.b16 %v648, %v647
      %v669 = vpack.c.b16 %v650, %v649
      %v670 = vpack.c.b16 %v652, %v651
      %v671 = vpack.c.b16 %v654, %v653
      %v672 = vpack.c.b16 %v656, %v655
      %v674 = vsel %vm379, %v657, 0
      %v677 = vsel %vm379, %v658, 0
      %v680 = vsel %vm379, %v659, 0
      %v683 = vsel %vm379, %v660, 0
      %v686 = vsel %vm379, %v661, 0
      %v689 = vsel %vm379, %v662, 0
      %v692 = vsel %vm379, %v663, 0
      %v695 = vsel %vm379, %v664, 0
      %v698 = vsel %vm379, %v665, 0
      %v701 = vsel %vm379, %v666, 0
      %v704 = vsel %vm379, %v667, 0
      %v707 = vsel %vm379, %v668, 0
      %v710 = vsel %vm379, %v669, 0
      %v713 = vsel %vm379, %v670, 0
      %v716 = vsel %vm379, %v671, 0
      %v719 = vsel %vm379, %v672, 0
      %v722 = vsel %vm428, %v259, 0
      %724 = vmatprep.subr.bf16.mxu0 0
      %725 = vmatpush1.bf16.msra.mxu0 %v722
      %726 = vmatprep.subr.bf16.mxu0 0
      %727 = vmatpush1.bf16.msra.mxu0 0
      %728 = vmatprep.subr.bf16.mxu0 0
      %729 = vmatpush1.bf16.msra.mxu0 0
      %730 = vmatprep.subr.bf16.mxu0 0
      %731 = vmatpush1.bf16.msra.mxu0 0
      %732 = vmatprep.subr.bf16.mxu0 0
      %733 = vmatpush1.bf16.msra.mxu0 0
      %734 = vmatprep.subr.bf16.mxu0 0
      %735 = vmatpush1.bf16.msra.mxu0 0
      %736 = vmatprep.subr.bf16.mxu0 0
      %737 = vmatpush1.bf16.msra.mxu0 0
      %738 = vmatprep.subr.bf16.mxu0 0
      %739 = vmatpush1.bf16.msra.mxu0 0
      %740 = vmatprep.subr.bf16.mxu0 0
      %741 = vmatpush1.bf16.msra.mxu0 0
      %742 = vmatprep.subr.bf16.mxu0 0
      %743 = vmatpush1.bf16.msra.mxu0 0
      %744 = vmatprep.subr.bf16.mxu0 0
      %745 = vmatpush1.bf16.msra.mxu0 0
      %746 = vmatprep.subr.bf16.mxu0 0
      %747 = vmatpush1.bf16.msra.mxu0 0
      %748 = vmatprep.subr.bf16.mxu0 0
      %749 = vmatpush1.bf16.msra.mxu0 0
      %750 = vmatprep.subr.bf16.mxu0 0
      %751 = vmatpush1.bf16.msra.mxu0 0
      %752 = vmatprep.subr.bf16.mxu0 0
      %753 = vmatpush1.bf16.msra.mxu0 0
      %754 = vmatprep.subr.bf16.mxu0 0
      %755 = vmatpush1.bf16.msra.mxu0 0
      %756 = vmatprep.mubr.bf16.mxu0 0
      %757 = vmatmul.mubr.bf16.gmra.mrb[0].mxu0 %v674
      %v758 = vpop.f32.mrb[0].mxu0
      %v759 = vadd.f32 %v467, %v758
      %v760 = vpop.f32.mrb[0].mxu0
      %v761 = vpop.f32.mrb[0].mxu0
      %v762 = vadd.f32 %v470, %v761
      %v763 = vpop.f32.mrb[0].mxu0
      %764 = vmatprep.mubr.bf16.mxu0 0
      %765 = vmatmul.mubr.bf16.gmra.mrb[0].mxu0 %v677
      %v766 = vpop.f32.mrb[0].mxu0
      %v767 = vadd.f32 %v475, %v766
      %v768 = vpop.f32.mrb[0].mxu0
      %v769 = vpop.f32.mrb[0].mxu0
      %v770 = vadd.f32 %v478, %v769
      %v771 = vpop.f32.mrb[0].mxu0
      %772 = vmatprep.mubr.bf16.mxu0 0
      %773 = vmatmul.mubr.bf16.gmra.mrb[0].mxu0 %v680
      %v774 = vpop.f32.mrb[0].mxu0
      %v775 = vadd.f32 %v483, %v774
      %v776 = vpop.f32.mrb[0].mxu0
      %v777 = vpop.f32.mrb[0].mxu0
      %v778 = vadd.f32 %v486, %v777
      %v779 = vpop.f32.mrb[0].mxu0
      %780 = vmatprep.mubr.bf16.mxu0 0
      %781 = vmatmul.mubr.bf16.gmra.mrb[0].mxu0 %v683
      %v782 = vpop.f32.mrb[0].mxu0
      %v783 = vadd.f32 %v491, %v782
      %v784 = vpop.f32.mrb[0].mxu0
      %v785 = vpop.f32.mrb[0].mxu0
      %v786 = vadd.f32 %v494, %v785
      %v787 = vpop.f32.mrb[0].mxu0
      %788 = vmatprep.mubr.bf16.mxu0 0
      %789 = vmatmul.mubr.bf16.gmra.mrb[0].mxu0 %v686
      %v790 = vpop.f32.mrb[0].mxu0
      %v791 = vadd.f32 %v499, %v790
      %v792 = vpop.f32.mrb[0].mxu0
      %v793 = vpop.f32.mrb[0].mxu0
      %v794 = vadd.f32 %v502, %v793
      %v795 = vpop.f32.mrb[0].mxu0
      %796 = vmatprep.mubr.bf16.mxu0 0
      %797 = vmatmul.mubr.bf16.gmra.mrb[0].mxu0 %v689
      %v798 = vpop.f32.mrb[0].mxu0
      %v799 = vadd.f32 %v507, %v798
      %v800 = vpop.f32.mrb[0].mxu0
      %v801 = vpop.f32.mrb[0].mxu0
      %v802 = vadd.f32 %v510, %v801
      %v803 = vpop.f32.mrb[0].mxu0
      %804 = vmatprep.mubr.bf16.mxu0 0
      %805 = vmatmul.mubr.bf16.gmra.mrb[0].mxu0 %v692
      %v806 = vpop.f32.mrb[0].mxu0
      %v807 = vadd.f32 %v515, %v806
      %v808 = vpop.f32.mrb[0].mxu0
      %v809 = vpop.f32.mrb[0].mxu0
      %v810 = vadd.f32 %v518, %v809
      %v811 = vpop.f32.mrb[0].mxu0
      %812 = vmatprep.mubr.bf16.mxu0 0
      %813 = vmatmul.mubr.bf16.gmra.mrb[0].mxu0 %v695
      %v814 = vpop.f32.mrb[0].mxu0
      %v815 = vadd.f32 %v523, %v814
      %v816 = vpop.f32.mrb[0].mxu0
      %v817 = vpop.f32.mrb[0].mxu0
      %v818 = vadd.f32 %v526, %v817
      %v819 = vpop.f32.mrb[0].mxu0
      %820 = vmatprep.mubr.bf16.mxu0 0
      %821 = vmatmul.mubr.bf16.gmra.mrb[0].mxu0 %v698
      %v822 = vpop.f32.mrb[0].mxu0
      %v823 = vadd.f32 %v531, %v822
      %v824 = vpop.f32.mrb[0].mxu0
      %v825 = vpop.f32.mrb[0].mxu0
      %v826 = vadd.f32 %v534, %v825
      %v827 = vpop.f32.mrb[0].mxu0
      %828 = vmatprep.mubr.bf16.mxu0 0
      %829 = vmatmul.mubr.bf16.gmra.mrb[0].mxu0 %v701
      %v830 = vpop.f32.mrb[0].mxu0
      %v831 = vadd.f32 %v539, %v830
      %v832 = vpop.f32.mrb[0].mxu0
      %v833 = vpop.f32.mrb[0].mxu0
      %v834 = vadd.f32 %v542, %v833
      %v835 = vpop.f32.mrb[0].mxu0
      %836 = vmatprep.mubr.bf16.mxu0 0
      %837 = vmatmul.mubr.bf16.gmra.mrb[0].mxu0 %v704
      %v838 = vpop.f32.mrb[0].mxu0
      %v839 = vadd.f32 %v547, %v838
      %v840 = vpop.f32.mrb[0].mxu0
      %v841 = vpop.f32.mrb[0].mxu0
      %v842 = vadd.f32 %v550, %v841
      %v843 = vpop.f32.mrb[0].mxu0
      %844 = vmatprep.mubr.bf16.mxu0 0
      %845 = vmatmul.mubr.bf16.gmra.mrb[0].mxu0 %v707
      %v846 = vpop.f32.mrb[0].mxu0
      %v847 = vadd.f32 %v555, %v846
      %v848 = vpop.f32.mrb[0].mxu0
      %v849 = vpop.f32.mrb[0].mxu0
      %v850 = vadd.f32 %v558, %v849
      %v851 = vpop.f32.mrb[0].mxu0
      %852 = vmatprep.mubr.bf16.mxu0 0
      %853 = vmatmul.mubr.bf16.gmra.mrb[0].mxu0 %v710
      %v854 = vpop.f32.mrb[0].mxu0
      %v855 = vadd.f32 %v563, %v854
      %v856 = vpop.f32.mrb[0].mxu0
      %v857 = vpop.f32.mrb[0].mxu0
      %v858 = vadd.f32 %v566, %v857
      %v859 = vpop.f32.mrb[0].mxu0
      %860 = vmatprep.mubr.bf16.mxu0 0
      %861 = vmatmul.mubr.bf16.gmra.mrb[0].mxu0 %v713
      %v862 = vpop.f32.mrb[0].mxu0
      %v863 = vadd.f32 %v571, %v862
      %v864 = vpop.f32.mrb[0].mxu0
      %v865 = vpop.f32.mrb[0].mxu0
      %v866 = vadd.f32 %v574, %v865
      %v867 = vpop.f32.mrb[0].mxu0
      %868 = vmatprep.mubr.bf16.mxu0 0
      %869 = vmatmul.mubr.bf16.gmra.mrb[0].mxu0 %v716
      %v870 = vpop.f32.mrb[0].mxu0
      %v871 = vadd.f32 %v579, %v870
      %v872 = vpop.f32.mrb[0].mxu0
      %v873 = vpop.f32.mrb[0].mxu0
      %v874 = vadd.f32 %v582, %v873
      %v875 = vpop.f32.mrb[0].mxu0
      %876 = vmatprep.mubr.bf16.mxu0 0
      %877 = vmatmul.mubr.bf16.gmra.mrb[0].mxu0 %v719
      %v878 = vpop.f32.mrb[0].mxu0
      %v879 = vadd.f32 %v587, %v878
      %v880 = vpop.f32.mrb[0].mxu0
      %v881 = vpop.f32.mrb[0].mxu0
      %v882 = vadd.f32 %v590, %v881
      %v883 = vpop.f32.mrb[0].mxu0
      %884 = vdwg.mxu0
      %s885 = sadd.s32 %s222, 32
      %s886 = sshra.s32 %s885, 3
      %s887 = sand.u32 %s885, 7
      %s888 = smul.addr %s886, 4
      %s889 = scalar_lea.vmem %s210, %s888
      %v890 = vld [vmem:[%s889] sm:$0xf]
      %v891 = vld [vmem:[%s889 + $0x4] sm:$0xf]
      %v892 = vld [vmem:[%s889 + $0x8] sm:$0xf]
      %v893 = vld [vmem:[%s889 + $0xc] sm:$0xf]
      %v894 = vld [vmem:[%s889 + $0x10] sm:$0xf]
      %v895 = vld [vmem:[%s889 + $0x14] sm:$0xf]
      %v896 = vld [vmem:[%s889 + $0x18] sm:$0xf]
      %v897 = vld [vmem:[%s889 + $0x1c] sm:$0xf]
      %v898 = vld [vmem:[%s889 + $0x20] sm:$0xf]
      %v899 = vld [vmem:[%s889 + $0x24] sm:$0xf]
      %v900 = vld [vmem:[%s889 + $0x28] sm:$0xf]
      %v901 = vld [vmem:[%s889 + $0x2c] sm:$0xf]
      %v902 = vld [vmem:[%s889 + $0x30] sm:$0xf]
      %v903 = vld [vmem:[%s889 + $0x34] sm:$0xf]
      %v904 = vld [vmem:[%s889 + $0x38] sm:$0xf]
      %v905 = vld [vmem:[%s889 + $0x3c] sm:$0xf]
      %v906 = vld [vmem:[%s889 + $0x40] sm:$0xf]
      %v907 = vld [vmem:[%s889 + $0x44] sm:$0xf]
      %v908 = vld [vmem:[%s889 + $0x48] sm:$0xf]
      %v909 = vld [vmem:[%s889 + $0x4c] sm:$0xf]
      %v910 = vld [vmem:[%s889 + $0x50] sm:$0xf]
      %v911 = vld [vmem:[%s889 + $0x54] sm:$0xf]
      %v912 = vld [vmem:[%s889 + $0x58] sm:$0xf]
      %v913 = vld [vmem:[%s889 + $0x5c] sm:$0xf]
      %v914 = vld [vmem:[%s889 + $0x60] sm:$0xf]
      %v915 = vld [vmem:[%s889 + $0x64] sm:$0xf]
      %v916 = vld [vmem:[%s889 + $0x68] sm:$0xf]
      %v917 = vld [vmem:[%s889 + $0x6c] sm:$0xf]
      %v918 = vld [vmem:[%s889 + $0x70] sm:$0xf]
      %v919 = vld [vmem:[%s889 + $0x74] sm:$0xf]
      %v920 = vld [vmem:[%s889 + $0x78] sm:$0xf]
      %v921 = vld [vmem:[%s889 + $0x7c] sm:$0xf]
      %s922 = scalar_lea.vmem %s1, 4
      %v923 = vld [vmem:[%s922] sm:$0x3]
      %v956 = vunpack.c.l.b16 %v890
      %v957 = vunpack.c.l.b16 %v891
      %v958 = vunpack.c.l.b16 %v892
      %v959 = vunpack.c.l.b16 %v893
      %v960 = vunpack.c.l.b16 %v894
      %v961 = vunpack.c.l.b16 %v895
      %v962 = vunpack.c.l.b16 %v896
      %v963 = vunpack.c.l.b16 %v897
      %v964 = vunpack.c.l.b16 %v898
      %v965 = vunpack.c.l.b16 %v899
      %v966 = vunpack.c.l.b16 %v900
      %v967 = vunpack.c.l.b16 %v901
      %v968 = vunpack.c.l.b16 %v902
      %v969 = vunpack.c.l.b16 %v903
      %v970 = vunpack.c.l.b16 %v904
      %v971 = vunpack.c.l.b16 %v905
      %v972 = vunpack.c.l.b16 %v906
      %v973 = vunpack.c.l.b16 %v907
      %v974 = vunpack.c.l.b16 %v908
      %v975 = vunpack.c.l.b16 %v909
      %v976 = vunpack.c.l.b16 %v910
      %v977 = vunpack.c.l.b16 %v911
      %v978 = vunpack.c.l.b16 %v912
      %v979 = vunpack.c.l.b16 %v913
      %v980 = vunpack.c.l.b16 %v914
      %v981 = vunpack.c.l.b16 %v915
      %v982 = vunpack.c.l.b16 %v916
      %v983 = vunpack.c.l.b16 %v917
      %v984 = vunpack.c.l.b16 %v918
      %v985 = vunpack.c.l.b16 %v919
      %v986 = vunpack.c.l.b16 %v920
      %v987 = vunpack.c.l.b16 %v921
      %v988 = vpack.c.b16 %v957, %v956
      %v989 = vpack.c.b16 %v959, %v958
      %v990 = vpack.c.b16 %v961, %v960
      %v991 = vpack.c.b16 %v963, %v962
      %v992 = vpack.c.b16 %v965, %v964
      %v993 = vpack.c.b16 %v967, %v966
      %v994 = vpack.c.b16 %v969, %v968
      %v995 = vpack.c.b16 %v971, %v970
      %v996 = vpack.c.b16 %v973, %v972
      %v997 = vpack.c.b16 %v975, %v974
      %v998 = vpack.c.b16 %v977, %v976
      %v999 = vpack.c.b16 %v979, %v978
      %v1000 = vpack.c.b16 %v981, %v980
      %v1001 = vpack.c.b16 %v983, %v982
      %v1002 = vpack.c.b16 %v985, %v984
      %v1003 = vpack.c.b16 %v987, %v986
      %v1005 = vsel %vm379, %v988, 0
      %v1008 = vsel %vm379, %v989, 0
      %v1011 = vsel %vm379, %v990, 0
      %v1014 = vsel %vm379, %v991, 0
      %v1017 = vsel %vm379, %v992, 0
      %v1020 = vsel %vm379, %v993, 0
      %v1023 = vsel %vm379, %v994, 0
      %v1026 = vsel %vm379, %v995, 0
      %v1029 = vsel %vm379, %v996, 0
      %v1032 = vsel %vm379, %v997, 0
      %v1035 = vsel %vm379, %v998, 0
      %v1038 = vsel %vm379, %v999, 0
      %v1041 = vsel %vm379, %v1000, 0
      %v1044 = vsel %vm379, %v1001, 0
      %v1047 = vsel %vm379, %v1002, 0
      %v1050 = vsel %vm379, %v1003, 0
      %v1053 = vsel %vm428, %v923, 0
      %1055 = vmatprep.subr.bf16.mxu0 0
      %1056 = vmatpush1.bf16.msra.mxu0 %v1053
      %1057 = vmatprep.subr.bf16.mxu0 0
      %1058 = vmatpush1.bf16.msra.mxu0 0
      %1059 = vmatprep.subr.bf16.mxu0 0
      %1060 = vmatpush1.bf16.msra.mxu0 0
      %1061 = vmatprep.subr.bf16.mxu0 0
      %1062 = vmatpush1.bf16.msra.mxu0 0
      %1063 = vmatprep.subr.bf16.mxu0 0
      %1064 = vmatpush1.bf16.msra.mxu0 0
      %1065 = vmatprep.subr.bf16.mxu0 0
      %1066 = vmatpush1.bf16.msra.mxu0 0
      %1067 = vmatprep.subr.bf16.mxu0 0
      %1068 = vmatpush1.bf16.msra.mxu0 0
      %1069 = vmatprep.subr.bf16.mxu0 0
      %1070 = vmatpush1.bf16.msra.mxu0 0
      %1071 = vmatprep.subr.bf16.mxu0 0
      %1072 = vmatpush1.bf16.msra.mxu0 0
      %1073 = vmatprep.subr.bf16.mxu0 0
      %1074 = vmatpush1.bf16.msra.mxu0 0
      %1075 = vmatprep.subr.bf16.mxu0 0
      %1076 = vmatpush1.bf16.msra.mxu0 0
      %1077 = vmatprep.subr.bf16.mxu0 0
      %1078 = vmatpush1.bf16.msra.mxu0 0
      %1079 = vmatprep.subr.bf16.mxu0 0
      %1080 = vmatpush1.bf16.msra.mxu0 0
      %1081 = vmatprep.subr.bf16.mxu0 0
      %1082 = vmatpush1.bf16.msra.mxu0 0
      %1083 = vmatprep.subr.bf16.mxu0 0
      %1084 = vmatpush1.bf16.msra.mxu0 0
      %1085 = vmatprep.subr.bf16.mxu0 0
      %1086 = vmatpush1.bf16.msra.mxu0 0
      %1087 = vmatprep.mubr.bf16.mxu0 0
      %1088 = vmatmul.mubr.bf16.gmra.mrb[0].mxu0 %v1005
      %v1089 = vpop.f32.mrb[0].mxu0
      %v1090 = vadd.f32 0.0, %v1089
      %v1091 = vpop.f32.mrb[0].mxu0
      %v1092 = vpop.f32.mrb[0].mxu0
      %v1093 = vadd.f32 0.0, %v1092
      %v1094 = vpop.f32.mrb[0].mxu0
      %1095 = vmatprep.mubr.bf16.mxu0 0
      %1096 = vmatmul.mubr.bf16.gmra.mrb[0].mxu0 %v1008
      %v1097 = vpop.f32.mrb[0].mxu0
      %v1098 = vadd.f32 0.0, %v1097
      %v1099 = vpop.f32.mrb[0].mxu0
      %v1100 = vpop.f32.mrb[0].mxu0
      %v1101 = vadd.f32 0.0, %v1100
      %v1102 = vpop.f32.mrb[0].mxu0
      %1103 = vmatprep.mubr.bf16.mxu0 0
      %1104 = vmatmul.mubr.bf16.gmra.mrb[0].mxu0 %v1011
      %v1105 = vpop.f32.mrb[0].mxu0
      %v1106 = vadd.f32 0.0, %v1105
      %v1107 = vpop.f32.mrb[0].mxu0
      %v1108 = vpop.f32.mrb[0].mxu0
      %v1109 = vadd.f32 0.0, %v1108
      %v1110 = vpop.f32.mrb[0].mxu0
      %1111 = vmatprep.mubr.bf16.mxu0 0
      %1112 = vmatmul.mubr.bf16.gmra.mrb[0].mxu0 %v1014
      %v1113 = vpop.f32.mrb[0].mxu0
      %v1114 = vadd.f32 0.0, %v1113
      %v1115 = vpop.f32.mrb[0].mxu0
      %v1116 = vpop.f32.mrb[0].mxu0
      %v1117 = vadd.f32 0.0, %v1116
      %v1118 = vpop.f32.mrb[0].mxu0
      %1119 = vmatprep.mubr.bf16.mxu0 0
      %1120 = vmatmul.mubr.bf16.gmra.mrb[0].mxu0 %v1017
      %v1121 = vpop.f32.mrb[0].mxu0
      %v1122 = vadd.f32 0.0, %v1121
      %v1123 = vpop.f32.mrb[0].mxu0
      %v1124 = vpop.f32.mrb[0].mxu0
      %v1125 = vadd.f32 0.0, %v1124
      %v1126 = vpop.f32.mrb[0].mxu0
      %1127 = vmatprep.mubr.bf16.mxu0 0
      %1128 = vmatmul.mubr.bf16.gmra.mrb[0].mxu0 %v1020
      %v1129 = vpop.f32.mrb[0].mxu0
      %v1130 = vadd.f32 0.0, %v1129
      %v1131 = vpop.f32.mrb[0].mxu0
      %v1132 = vpop.f32.mrb[0].mxu0
      %v1133 = vadd.f32 0.0, %v1132
      %v1134 = vpop.f32.mrb[0].mxu0
      %1135 = vmatprep.mubr.bf16.mxu0 0
      %1136 = vmatmul.mubr.bf16.gmra.mrb[0].mxu0 %v1023
      %v1137 = vpop.f32.mrb[0].mxu0
      %v1138 = vadd.f32 0.0, %v1137
      %v1139 = vpop.f32.mrb[0].mxu0
      %v1140 = vpop.f32.mrb[0].mxu0
      %v1141 = vadd.f32 0.0, %v1140
      %v1142 = vpop.f32.mrb[0].mxu0
      %1143 = vmatprep.mubr.bf16.mxu0 0
      %1144 = vmatmul.mubr.bf16.gmra.mrb[0].mxu0 %v1026
      %v1145 = vpop.f32.mrb[0].mxu0
      %v1146 = vadd.f32 0.0, %v1145
      %v1147 = vpop.f32.mrb[0].mxu0
      %v1148 = vpop.f32.mrb[0].mxu0
      %v1149 = vadd.f32 0.0, %v1148
      %v1150 = vpop.f32.mrb[0].mxu0
      %1151 = vmatprep.mubr.bf16.mxu0 0
      %1152 = vmatmul.mubr.bf16.gmra.mrb[0].mxu0 %v1029
      %v1153 = vpop.f32.mrb[0].mxu0
      %v1154 = vadd.f32 0.0, %v1153
      %v1155 = vpop.f32.mrb[0].mxu0
      %v1156 = vpop.f32.mrb[0].mxu0
      %v1157 = vadd.f32 0.0, %v1156
      %v1158 = vpop.f32.mrb[0].mxu0
      %1159 = vmatprep.mubr.bf16.mxu0 0
      %1160 = vmatmul.mubr.bf16.gmra.mrb[0].mxu0 %v1032
      %v1161 = vpop.f32.mrb[0].mxu0
      %v1162 = vadd.f32 0.0, %v1161
      %v1163 = vpop.f32.mrb[0].mxu0
      %v1164 = vpop.f32.mrb[0].mxu0
      %v1165 = vadd.f32 0.0, %v1164
      %v1166 = vpop.f32.mrb[0].mxu0
      %1167 = vmatprep.mubr.bf16.mxu0 0
      %1168 = vmatmul.mubr.bf16.gmra.mrb[0].mxu0 %v1035
      %v1169 = vpop.f32.mrb[0].mxu0
      %v1170 = vadd.f32 0.0, %v1169
      %v1171 = vpop.f32.mrb[0].mxu0
      %v1172 = vpop.f32.mrb[0].mxu0
      %v1173 = vadd.f32 0.0, %v1172
      %v1174 = vpop.f32.mrb[0].mxu0
      %1175 = vmatprep.mubr.bf16.mxu0 0
      %1176 = vmatmul.mubr.bf16.gmra.mrb[0].mxu0 %v1038
      %v1177 = vpop.f32.mrb[0].mxu0
      %v1178 = vadd.f32 0.0, %v1177
      %v1179 = vpop.f32.mrb[0].mxu0
      %v1180 = vpop.f32.mrb[0].mxu0
      %v1181 = vadd.f32 0.0, %v1180
      %v1182 = vpop.f32.mrb[0].mxu0
      %1183 = vmatprep.mubr.bf16.mxu0 0
      %1184 = vmatmul.mubr.bf16.gmra.mrb[0].mxu0 %v1041
      %v1185 = vpop.f32.mrb[0].mxu0
      %v1186 = vadd.f32 0.0, %v1185
      %v1187 = vpop.f32.mrb[0].mxu0
      %v1188 = vpop.f32.mrb[0].mxu0
      %v1189 = vadd.f32 0.0, %v1188
      %v1190 = vpop.f32.mrb[0].mxu0
      %1191 = vmatprep.mubr.bf16.mxu0 0
      %1192 = vmatmul.mubr.bf16.gmra.mrb[0].mxu0 %v1044
      %v1193 = vpop.f32.mrb[0].mxu0
      %v1194 = vadd.f32 0.0, %v1193
      %v1195 = vpop.f32.mrb[0].mxu0
      %v1196 = vpop.f32.mrb[0].mxu0
      %v1197 = vadd.f32 0.0, %v1196
      %v1198 = vpop.f32.mrb[0].mxu0
      %1199 = vmatprep.mubr.bf16.mxu0 0
      %1200 = vmatmul.mubr.bf16.gmra.mrb[0].mxu0 %v1047
      %v1201 = vpop.f32.mrb[0].mxu0
      %v1202 = vadd.f32 0.0, %v1201
      %v1203 = vpop.f32.mrb[0].mxu0
      %v1204 = vpop.f32.mrb[0].mxu0
      %v1205 = vadd.f32 0.0, %v1204
      %v1206 = vpop.f32.mrb[0].mxu0
      %1207 = vmatprep.mubr.bf16.mxu0 0
      %1208 = vmatmul.mubr.bf16.gmra.mrb[0].mxu0 %v1050
      %v1209 = vpop.f32.mrb[0].mxu0
      %v1210 = vadd.f32 0.0, %v1209
      %v1211 = vpop.f32.mrb[0].mxu0
      %v1212 = vpop.f32.mrb[0].mxu0
      %v1213 = vadd.f32 0.0, %v1212
      %v1214 = vpop.f32.mrb[0].mxu0
      %1215 = vdwg.mxu0
      %v1216 = vadd.f32 %v759, %v1090
      %v1217 = vadd.f32 %v762, %v1093
      %v1218 = vadd.f32 %v767, %v1098
      %v1219 = vadd.f32 %v770, %v1101
      %v1220 = vadd.f32 %v775, %v1106
      %v1221 = vadd.f32 %v778, %v1109
      %v1222 = vadd.f32 %v783, %v1114
      %v1223 = vadd.f32 %v786, %v1117
      %v1224 = vadd.f32 %v791, %v1122
      %v1225 = vadd.f32 %v794, %v1125
      %v1226 = vadd.f32 %v799, %v1130
      %v1227 = vadd.f32 %v802, %v1133
      %v1228 = vadd.f32 %v807, %v1138
      %v1229 = vadd.f32 %v810, %v1141
      %v1230 = vadd.f32 %v815, %v1146
      %v1231 = vadd.f32 %v818, %v1149
      %v1232 = vadd.f32 %v823, %v1154
      %v1233 = vadd.f32 %v826, %v1157
      %v1234 = vadd.f32 %v831, %v1162
      %v1235 = vadd.f32 %v834, %v1165
      %v1236 = vadd.f32 %v839, %v1170
      %v1237 = vadd.f32 %v842, %v1173
      %v1238 = vadd.f32 %v847, %v1178
      %v1239 = vadd.f32 %v850, %v1181
      %v1240 = vadd.f32 %v855, %v1186
      %v1241 = vadd.f32 %v858, %v1189
      %v1242 = vadd.f32 %v863, %v1194
      %v1243 = vadd.f32 %v866, %v1197
      %v1244 = vadd.f32 %v871, %v1202
      %v1245 = vadd.f32 %v874, %v1205
      %v1246 = vadd.f32 %v879, %v1210
      %v1247 = vadd.f32 %v882, %v1213
      %s1248 = sadd.s32 %s222, 48
      %s1249 = sshra.s32 %s1248, 3
      %s1250 = sand.u32 %s1248, 7
      %s1251 = smul.addr %s1249, 4
      %s1252 = scalar_lea.vmem %s210, %s1251
      %v1253 = vld [vmem:[%s1252] sm:$0xf]
      %v1254 = vld [vmem:[%s1252 + $0x4] sm:$0xf]
      %v1255 = vld [vmem:[%s1252 + $0x8] sm:$0xf]
      %v1256 = vld [vmem:[%s1252 + $0xc] sm:$0xf]
      %v1257 = vld [vmem:[%s1252 + $0x10] sm:$0xf]
      %v1258 = vld [vmem:[%s1252 + $0x14] sm:$0xf]
      %v1259 = vld [vmem:[%s1252 + $0x18] sm:$0xf]
      %v1260 = vld [vmem:[%s1252 + $0x1c] sm:$0xf]
      %v1261 = vld [vmem:[%s1252 + $0x20] sm:$0xf]
      %v1262 = vld [vmem:[%s1252 + $0x24] sm:$0xf]
      %v1263 = vld [vmem:[%s1252 + $0x28] sm:$0xf]
      %v1264 = vld [vmem:[%s1252 + $0x2c] sm:$0xf]
      %v1265 = vld [vmem:[%s1252 + $0x30] sm:$0xf]
      %v1266 = vld [vmem:[%s1252 + $0x34] sm:$0xf]
      %v1267 = vld [vmem:[%s1252 + $0x38] sm:$0xf]
      %v1268 = vld [vmem:[%s1252 + $0x3c] sm:$0xf]
      %v1269 = vld [vmem:[%s1252 + $0x40] sm:$0xf]
      %v1270 = vld [vmem:[%s1252 + $0x44] sm:$0xf]
      %v1271 = vld [vmem:[%s1252 + $0x48] sm:$0xf]
      %v1272 = vld [vmem:[%s1252 + $0x4c] sm:$0xf]
      %v1273 = vld [vmem:[%s1252 + $0x50] sm:$0xf]
      %v1274 = vld [vmem:[%s1252 + $0x54] sm:$0xf]
      %v1275 = vld [vmem:[%s1252 + $0x58] sm:$0xf]
      %v1276 = vld [vmem:[%s1252 + $0x5c] sm:$0xf]
      %v1277 = vld [vmem:[%s1252 + $0x60] sm:$0xf]
      %v1278 = vld [vmem:[%s1252 + $0x64] sm:$0xf]
      %v1279 = vld [vmem:[%s1252 + $0x68] sm:$0xf]
      %v1280 = vld [vmem:[%s1252 + $0x6c] sm:$0xf]
      %v1281 = vld [vmem:[%s1252 + $0x70] sm:$0xf]
      %v1282 = vld [vmem:[%s1252 + $0x74] sm:$0xf]
      %v1283 = vld [vmem:[%s1252 + $0x78] sm:$0xf]
      %v1284 = vld [vmem:[%s1252 + $0x7c] sm:$0xf]
      %s1285 = scalar_lea.vmem %s1, 6
      %v1286 = vld [vmem:[%s1285] sm:$0x3]
      %v1319 = vunpack.c.l.b16 %v1253
      %v1320 = vunpack.c.l.b16 %v1254
      %v1321 = vunpack.c.l.b16 %v1255
      %v1322 = vunpack.c.l.b16 %v1256
      %v1323 = vunpack.c.l.b16 %v1257
      %v1324 = vunpack.c.l.b16 %v1258
      %v1325 = vunpack.c.l.b16 %v1259
      %v1326 = vunpack.c.l.b16 %v1260
      %v1327 = vunpack.c.l.b16 %v1261
      %v1328 = vunpack.c.l.b16 %v1262
      %v1329 = vunpack.c.l.b16 %v1263
      %v1330 = vunpack.c.l.b16 %v1264
      %v1331 = vunpack.c.l.b16 %v1265
      %v1332 = vunpack.c.l.b16 %v1266
      %v1333 = vunpack.c.l.b16 %v1267
      %v1334 = vunpack.c.l.b16 %v1268
      %v1335 = vunpack.c.l.b16 %v1269
      %v1336 = vunpack.c.l.b16 %v1270
      %v1337 = vunpack.c.l.b16 %v1271
      %v1338 = vunpack.c.l.b16 %v1272
      %v1339 = vunpack.c.l.b16 %v1273
      %v1340 = vunpack.c.l.b16 %v1274
      %v1341 = vunpack.c.l.b16 %v1275
      %v1342 = vunpack.c.l.b16 %v1276
      %v1343 = vunpack.c.l.b16 %v1277
      %v1344 = vunpack.c.l.b16 %v1278
      %v1345 = vunpack.c.l.b16 %v1279
      %v1346 = vunpack.c.l.b16 %v1280
      %v1347 = vunpack.c.l.b16 %v1281
      %v1348 = vunpack.c.l.b16 %v1282
      %v1349 = vunpack.c.l.b16 %v1283
      %v1350 = vunpack.c.l.b16 %v1284
      %v1351 = vpack.c.b16 %v1320, %v1319
      %v1352 = vpack.c.b16 %v1322, %v1321
      %v1353 = vpack.c.b16 %v1324, %v1323
      %v1354 = vpack.c.b16 %v1326, %v1325
      %v1355 = vpack.c.b16 %v1328, %v1327
      %v1356 = vpack.c.b16 %v1330, %v1329
      %v1357 = vpack.c.b16 %v1332, %v1331
      %v1358 = vpack.c.b16 %v1334, %v1333
      %v1359 = vpack.c.b16 %v1336, %v1335
      %v1360 = vpack.c.b16 %v1338, %v1337
      %v1361 = vpack.c.b16 %v1340, %v1339
      %v1362 = vpack.c.b16 %v1342, %v1341
      %v1363 = vpack.c.b16 %v1344, %v1343
      %v1364 = vpack.c.b16 %v1346, %v1345
      %v1365 = vpack.c.b16 %v1348, %v1347
      %v1366 = vpack.c.b16 %v1350, %v1349
      %v1368 = vsel %vm379, %v1351, 0
      %v1371 = vsel %vm379, %v1352, 0
      %v1374 = vsel %vm379, %v1353, 0
      %v1377 = vsel %vm379, %v1354, 0
      %v1380 = vsel %vm379, %v1355, 0
      %v1383 = vsel %vm379, %v1356, 0
      %v1386 = vsel %vm379, %v1357, 0
      %v1389 = vsel %vm379, %v1358, 0
      %v1392 = vsel %vm379, %v1359, 0
      %v1395 = vsel %vm379, %v1360, 0
      %v1398 = vsel %vm379, %v1361, 0
      %v1401 = vsel %vm379, %v1362, 0
      %v1404 = vsel %vm379, %v1363, 0
      %v1407 = vsel %vm379, %v1364, 0
      %v1410 = vsel %vm379, %v1365, 0
      %v1413 = vsel %vm379, %v1366, 0
      %v1416 = vsel %vm428, %v1286, 0
      %1418 = vmatprep.subr.bf16.mxu0 0
      %1419 = vmatpush1.bf16.msra.mxu0 %v1416
      %1420 = vmatprep.subr.bf16.mxu0 0
      %1421 = vmatpush1.bf16.msra.mxu0 0
      %1422 = vmatprep.subr.bf16.mxu0 0
      %1423 = vmatpush1.bf16.msra.mxu0 0
      %1424 = vmatprep.subr.bf16.mxu0 0
      %1425 = vmatpush1.bf16.msra.mxu0 0
      %1426 = vmatprep.subr.bf16.mxu0 0
      %1427 = vmatpush1.bf16.msra.mxu0 0
      %1428 = vmatprep.subr.bf16.mxu0 0
      %1429 = vmatpush1.bf16.msra.mxu0 0
      %1430 = vmatprep.subr.bf16.mxu0 0
      %1431 = vmatpush1.bf16.msra.mxu0 0
      %1432 = vmatprep.subr.bf16.mxu0 0
      %1433 = vmatpush1.bf16.msra.mxu0 0
      %1434 = vmatprep.subr.bf16.mxu0 0
      %1435 = vmatpush1.bf16.msra.mxu0 0
      %1436 = vmatprep.subr.bf16.mxu0 0
      %1437 = vmatpush1.bf16.msra.mxu0 0
      %1438 = vmatprep.subr.bf16.mxu0 0
      %1439 = vmatpush1.bf16.msra.mxu0 0
      %1440 = vmatprep.subr.bf16.mxu0 0
      %1441 = vmatpush1.bf16.msra.mxu0 0
      %1442 = vmatprep.subr.bf16.mxu0 0
      %1443 = vmatpush1.bf16.msra.mxu0 0
      %1444 = vmatprep.subr.bf16.mxu0 0
      %1445 = vmatpush1.bf16.msra.mxu0 0
      %1446 = vmatprep.subr.bf16.mxu0 0
      %1447 = vmatpush1.bf16.msra.mxu0 0
      %1448 = vmatprep.subr.bf16.mxu0 0
      %1449 = vmatpush1.bf16.msra.mxu0 0
      %1450 = vmatprep.mubr.bf16.mxu0 0
      %1451 = vmatmul.mubr.bf16.gmra.mrb[0].mxu0 %v1368
      %v1452 = vpop.f32.mrb[0].mxu0
      %v1453 = vadd.f32 0.0, %v1452
      %v1454 = vpop.f32.mrb[0].mxu0
      %v1455 = vpop.f32.mrb[0].mxu0
      %v1456 = vadd.f32 0.0, %v1455
      %v1457 = vpop.f32.mrb[0].mxu0
      %1458 = vmatprep.mubr.bf16.mxu0 0
      %1459 = vmatmul.mubr.bf16.gmra.mrb[0].mxu0 %v1371
      %v1460 = vpop.f32.mrb[0].mxu0
      %v1461 = vadd.f32 0.0, %v1460
      %v1462 = vpop.f32.mrb[0].mxu0
      %v1463 = vpop.f32.mrb[0].mxu0
      %v1464 = vadd.f32 0.0, %v1463
      %v1465 = vpop.f32.mrb[0].mxu0
      %1466 = vmatprep.mubr.bf16.mxu0 0
      %1467 = vmatmul.mubr.bf16.gmra.mrb[0].mxu0 %v1374
      %v1468 = vpop.f32.mrb[0].mxu0
      %v1469 = vadd.f32 0.0, %v1468
      %v1470 = vpop.f32.mrb[0].mxu0
      %v1471 = vpop.f32.mrb[0].mxu0
      %v1472 = vadd.f32 0.0, %v1471
      %v1473 = vpop.f32.mrb[0].mxu0
      %1474 = vmatprep.mubr.bf16.mxu0 0
      %1475 = vmatmul.mubr.bf16.gmra.mrb[0].mxu0 %v1377
      %v1476 = vpop.f32.mrb[0].mxu0
      %v1477 = vadd.f32 0.0, %v1476
      %v1478 = vpop.f32.mrb[0].mxu0
      %v1479 = vpop.f32.mrb[0].mxu0
      %v1480 = vadd.f32 0.0, %v1479
      %v1481 = vpop.f32.mrb[0].mxu0
      %1482 = vmatprep.mubr.bf16.mxu0 0
      %1483 = vmatmul.mubr.bf16.gmra.mrb[0].mxu0 %v1380
      %v1484 = vpop.f32.mrb[0].mxu0
      %v1485 = vadd.f32 0.0, %v1484
      %v1486 = vpop.f32.mrb[0].mxu0
      %v1487 = vpop.f32.mrb[0].mxu0
      %v1488 = vadd.f32 0.0, %v1487
      %v1489 = vpop.f32.mrb[0].mxu0
      %1490 = vmatprep.mubr.bf16.mxu0 0
      %1491 = vmatmul.mubr.bf16.gmra.mrb[0].mxu0 %v1383
      %v1492 = vpop.f32.mrb[0].mxu0
      %v1493 = vadd.f32 0.0, %v1492
      %v1494 = vpop.f32.mrb[0].mxu0
      %v1495 = vpop.f32.mrb[0].mxu0
      %v1496 = vadd.f32 0.0, %v1495
      %v1497 = vpop.f32.mrb[0].mxu0
      %1498 = vmatprep.mubr.bf16.mxu0 0
      %1499 = vmatmul.mubr.bf16.gmra.mrb[0].mxu0 %v1386
      %v1500 = vpop.f32.mrb[0].mxu0
      %v1501 = vadd.f32 0.0, %v1500
      %v1502 = vpop.f32.mrb[0].mxu0
      %v1503 = vpop.f32.mrb[0].mxu0
      %v1504 = vadd.f32 0.0, %v1503
      %v1505 = vpop.f32.mrb[0].mxu0
      %1506 = vmatprep.mubr.bf16.mxu0 0
      %1507 = vmatmul.mubr.bf16.gmra.mrb[0].mxu0 %v1389
      %v1508 = vpop.f32.mrb[0].mxu0
      %v1509 = vadd.f32 0.0, %v1508
      %v1510 = vpop.f32.mrb[0].mxu0
      %v1511 = vpop.f32.mrb[0].mxu0
      %v1512 = vadd.f32 0.0, %v1511
      %v1513 = vpop.f32.mrb[0].mxu0
      %1514 = vmatprep.mubr.bf16.mxu0 0
      %1515 = vmatmul.mubr.bf16.gmra.mrb[0].mxu0 %v1392
      %v1516 = vpop.f32.mrb[0].mxu0
      %v1517 = vadd.f32 0.0, %v1516
      %v1518 = vpop.f32.mrb[0].mxu0
      %v1519 = vpop.f32.mrb[0].mxu0
      %v1520 = vadd.f32 0.0, %v1519
      %v1521 = vpop.f32.mrb[0].mxu0
      %1522 = vmatprep.mubr.bf16.mxu0 0
      %1523 = vmatmul.mubr.bf16.gmra.mrb[0].mxu0 %v1395
      %v1524 = vpop.f32.mrb[0].mxu0
      %v1525 = vadd.f32 0.0, %v1524
      %v1526 = vpop.f32.mrb[0].mxu0
      %v1527 = vpop.f32.mrb[0].mxu0
      %v1528 = vadd.f32 0.0, %v1527
      %v1529 = vpop.f32.mrb[0].mxu0
      %1530 = vmatprep.mubr.bf16.mxu0 0
      %1531 = vmatmul.mubr.bf16.gmra.mrb[0].mxu0 %v1398
      %v1532 = vpop.f32.mrb[0].mxu0
      %v1533 = vadd.f32 0.0, %v1532
      %v1534 = vpop.f32.mrb[0].mxu0
      %v1535 = vpop.f32.mrb[0].mxu0
      %v1536 = vadd.f32 0.0, %v1535
      %v1537 = vpop.f32.mrb[0].mxu0
      %1538 = vmatprep.mubr.bf16.mxu0 0
      %1539 = vmatmul.mubr.bf16.gmra.mrb[0].mxu0 %v1401
      %v1540 = vpop.f32.mrb[0].mxu0
      %v1541 = vadd.f32 0.0, %v1540
      %v1542 = vpop.f32.mrb[0].mxu0
      %v1543 = vpop.f32.mrb[0].mxu0
      %v1544 = vadd.f32 0.0, %v1543
      %v1545 = vpop.f32.mrb[0].mxu0
      %1546 = vmatprep.mubr.bf16.mxu0 0
      %1547 = vmatmul.mubr.bf16.gmra.mrb[0].mxu0 %v1404
      %v1548 = vpop.f32.mrb[0].mxu0
      %v1549 = vadd.f32 0.0, %v1548
      %v1550 = vpop.f32.mrb[0].mxu0
      %v1551 = vpop.f32.mrb[0].mxu0
      %v1552 = vadd.f32 0.0, %v1551
      %v1553 = vpop.f32.mrb[0].mxu0
      %1554 = vmatprep.mubr.bf16.mxu0 0
      %1555 = vmatmul.mubr.bf16.gmra.mrb[0].mxu0 %v1407
      %v1556 = vpop.f32.mrb[0].mxu0
      %v1557 = vadd.f32 0.0, %v1556
      %v1558 = vpop.f32.mrb[0].mxu0
      %v1559 = vpop.f32.mrb[0].mxu0
      %v1560 = vadd.f32 0.0, %v1559
      %v1561 = vpop.f32.mrb[0].mxu0
      %1562 = vmatprep.mubr.bf16.mxu0 0
      %1563 = vmatmul.mubr.bf16.gmra.mrb[0].mxu0 %v1410
      %v1564 = vpop.f32.mrb[0].mxu0
      %v1565 = vadd.f32 0.0, %v1564
      %v1566 = vpop.f32.mrb[0].mxu0
      %v1567 = vpop.f32.mrb[0].mxu0
      %v1568 = vadd.f32 0.0, %v1567
      %v1569 = vpop.f32.mrb[0].mxu0
      %1570 = vmatprep.mubr.bf16.mxu0 0
      %1571 = vmatmul.mubr.bf16.gmra.mrb[0].mxu0 %v1413
      %v1572 = vpop.f32.mrb[0].mxu0
      %v1573 = vadd.f32 0.0, %v1572
      %v1574 = vpop.f32.mrb[0].mxu0
      %v1575 = vpop.f32.mrb[0].mxu0
      %v1576 = vadd.f32 0.0, %v1575
      %v1577 = vpop.f32.mrb[0].mxu0
      %1578 = vdwg.mxu0
      %v1579 = vadd.f32 %v1216, %v1453
      %v1580 = vadd.f32 %v1217, %v1456
      %v1581 = vadd.f32 %v1218, %v1461
      %v1582 = vadd.f32 %v1219, %v1464
      %v1583 = vadd.f32 %v1220, %v1469
      %v1584 = vadd.f32 %v1221, %v1472
      %v1585 = vadd.f32 %v1222, %v1477
      %v1586 = vadd.f32 %v1223, %v1480
      %v1587 = vadd.f32 %v1224, %v1485
      %v1588 = vadd.f32 %v1225, %v1488
      %v1589 = vadd.f32 %v1226, %v1493
      %v1590 = vadd.f32 %v1227, %v1496
      %v1591 = vadd.f32 %v1228, %v1501
      %v1592 = vadd.f32 %v1229, %v1504
      %v1593 = vadd.f32 %v1230, %v1509
      %v1594 = vadd.f32 %v1231, %v1512
      %v1595 = vadd.f32 %v1232, %v1517
      %v1596 = vadd.f32 %v1233, %v1520
      %v1597 = vadd.f32 %v1234, %v1525
      %v1598 = vadd.f32 %v1235, %v1528
      %v1599 = vadd.f32 %v1236, %v1533
      %v1600 = vadd.f32 %v1237, %v1536
      %v1601 = vadd.f32 %v1238, %v1541
      %v1602 = vadd.f32 %v1239, %v1544
      %v1603 = vadd.f32 %v1240, %v1549
      %v1604 = vadd.f32 %v1241, %v1552
      %v1605 = vadd.f32 %v1242, %v1557
      %v1606 = vadd.f32 %v1243, %v1560
      %v1607 = vadd.f32 %v1244, %v1565
      %v1608 = vadd.f32 %v1245, %v1568
      %v1609 = vadd.f32 %v1246, %v1573
      %v1610 = vadd.f32 %v1247, %v1576
      %s1611 = sadd.s32 %s222, 64
      %s1612 = sshra.s32 %s1611, 3
      %s1613 = sand.u32 %s1611, 7
      %s1614 = smul.addr %s1612, 4
      %s1615 = scalar_lea.vmem %s210, %s1614
      %v1616 = vld [vmem:[%s1615] sm:$0xf]
      %v1617 = vld [vmem:[%s1615 + $0x4] sm:$0xf]
      %v1618 = vld [vmem:[%s1615 + $0x8] sm:$0xf]
      %v1619 = vld [vmem:[%s1615 + $0xc] sm:$0xf]
      %v1620 = vld [vmem:[%s1615 + $0x10] sm:$0xf]
      %v1621 = vld [vmem:[%s1615 + $0x14] sm:$0xf]
      %v1622 = vld [vmem:[%s1615 + $0x18] sm:$0xf]
      %v1623 = vld [vmem:[%s1615 + $0x1c] sm:$0xf]
      %v1624 = vld [vmem:[%s1615 + $0x20] sm:$0xf]
      %v1625 = vld [vmem:[%s1615 + $0x24] sm:$0xf]
      %v1626 = vld [vmem:[%s1615 + $0x28] sm:$0xf]
      %v1627 = vld [vmem:[%s1615 + $0x2c] sm:$0xf]
      %v1628 = vld [vmem:[%s1615 + $0x30] sm:$0xf]
      %v1629 = vld [vmem:[%s1615 + $0x34] sm:$0xf]
      %v1630 = vld [vmem:[%s1615 + $0x38] sm:$0xf]
      %v1631 = vld [vmem:[%s1615 + $0x3c] sm:$0xf]
      %v1632 = vld [vmem:[%s1615 + $0x40] sm:$0xf]
      %v1633 = vld [vmem:[%s1615 + $0x44] sm:$0xf]
      %v1634 = vld [vmem:[%s1615 + $0x48] sm:$0xf]
      %v1635 = vld [vmem:[%s1615 + $0x4c] sm:$0xf]
      %v1636 = vld [vmem:[%s1615 + $0x50] sm:$0xf]
      %v1637 = vld [vmem:[%s1615 + $0x54] sm:$0xf]
      %v1638 = vld [vmem:[%s1615 + $0x58] sm:$0xf]
      %v1639 = vld [vmem:[%s1615 + $0x5c] sm:$0xf]
      %v1640 = vld [vmem:[%s1615 + $0x60] sm:$0xf]
      %v1641 = vld [vmem:[%s1615 + $0x64] sm:$0xf]
      %v1642 = vld [vmem:[%s1615 + $0x68] sm:$0xf]
      %v1643 = vld [vmem:[%s1615 + $0x6c] sm:$0xf]
      %v1644 = vld [vmem:[%s1615 + $0x70] sm:$0xf]
      %v1645 = vld [vmem:[%s1615 + $0x74] sm:$0xf]
      %v1646 = vld [vmem:[%s1615 + $0x78] sm:$0xf]
      %v1647 = vld [vmem:[%s1615 + $0x7c] sm:$0xf]
      %s1648 = scalar_lea.vmem %s1, 8
      %v1649 = vld [vmem:[%s1648] sm:$0x3]
      %v1682 = vunpack.c.l.b16 %v1616
      %v1683 = vunpack.c.l.b16 %v1617
      %v1684 = vunpack.c.l.b16 %v1618
      %v1685 = vunpack.c.l.b16 %v1619
      %v1686 = vunpack.c.l.b16 %v1620
      %v1687 = vunpack.c.l.b16 %v1621
      %v1688 = vunpack.c.l.b16 %v1622
      %v1689 = vunpack.c.l.b16 %v1623
      %v1690 = vunpack.c.l.b16 %v1624
      %v1691 = vunpack.c.l.b16 %v1625
      %v1692 = vunpack.c.l.b16 %v1626
      %v1693 = vunpack.c.l.b16 %v1627
      %v1694 = vunpack.c.l.b16 %v1628
      %v1695 = vunpack.c.l.b16 %v1629
      %v1696 = vunpack.c.l.b16 %v1630
      %v1697 = vunpack.c.l.b16 %v1631
      %v1698 = vunpack.c.l.b16 %v1632
      %v1699 = vunpack.c.l.b16 %v1633
      %v1700 = vunpack.c.l.b16 %v1634
      %v1701 = vunpack.c.l.b16 %v1635
      %v1702 = vunpack.c.l.b16 %v1636
      %v1703 = vunpack.c.l.b16 %v1637
      %v1704 = vunpack.c.l.b16 %v1638
      %v1705 = vunpack.c.l.b16 %v1639
      %v1706 = vunpack.c.l.b16 %v1640
      %v1707 = vunpack.c.l.b16 %v1641
      %v1708 = vunpack.c.l.b16 %v1642
      %v1709 = vunpack.c.l.b16 %v1643
      %v1710 = vunpack.c.l.b16 %v1644
      %v1711 = vunpack.c.l.b16 %v1645
      %v1712 = vunpack.c.l.b16 %v1646
      %v1713 = vunpack.c.l.b16 %v1647
      %v1714 = vpack.c.b16 %v1683, %v1682
      %v1715 = vpack.c.b16 %v1685, %v1684
      %v1716 = vpack.c.b16 %v1687, %v1686
      %v1717 = vpack.c.b16 %v1689, %v1688
      %v1718 = vpack.c.b16 %v1691, %v1690
      %v1719 = vpack.c.b16 %v1693, %v1692
      %v1720 = vpack.c.b16 %v1695, %v1694
      %v1721 = vpack.c.b16 %v1697, %v1696
      %v1722 = vpack.c.b16 %v1699, %v1698
      %v1723 = vpack.c.b16 %v1701, %v1700
      %v1724 = vpack.c.b16 %v1703, %v1702
      %v1725 = vpack.c.b16 %v1705, %v1704
      %v1726 = vpack.c.b16 %v1707, %v1706
      %v1727 = vpack.c.b16 %v1709, %v1708
      %v1728 = vpack.c.b16 %v1711, %v1710
      %v1729 = vpack.c.b16 %v1713, %v1712
      %v1731 = vsel %vm379, %v1714, 0
      %v1734 = vsel %vm379, %v1715, 0
      %v1737 = vsel %vm379, %v1716, 0
      %v1740 = vsel %vm379, %v1717, 0
      %v1743 = vsel %vm379, %v1718, 0
      %v1746 = vsel %vm379, %v1719, 0
      %v1749 = vsel %vm379, %v1720, 0
      %v1752 = vsel %vm379, %v1721, 0
      %v1755 = vsel %vm379, %v1722, 0
      %v1758 = vsel %vm379, %v1723, 0
      %v1761 = vsel %vm379, %v1724, 0
      %v1764 = vsel %vm379, %v1725, 0
      %v1767 = vsel %vm379, %v1726, 0
      %v1770 = vsel %vm379, %v1727, 0
      %v1773 = vsel %vm379, %v1728, 0
      %v1776 = vsel %vm379, %v1729, 0
      %v1779 = vsel %vm428, %v1649, 0
      %1781 = vmatprep.subr.bf16.mxu0 0
      %1782 = vmatpush1.bf16.msra.mxu0 %v1779
      %1783 = vmatprep.subr.bf16.mxu0 0
      %1784 = vmatpush1.bf16.msra.mxu0 0
      %1785 = vmatprep.subr.bf16.mxu0 0
      %1786 = vmatpush1.bf16.msra.mxu0 0
      %1787 = vmatprep.subr.bf16.mxu0 0
      %1788 = vmatpush1.bf16.msra.mxu0 0
      %1789 = vmatprep.subr.bf16.mxu0 0
      %1790 = vmatpush1.bf16.msra.mxu0 0
      %1791 = vmatprep.subr.bf16.mxu0 0
      %1792 = vmatpush1.bf16.msra.mxu0 0
      %1793 = vmatprep.subr.bf16.mxu0 0
      %1794 = vmatpush1.bf16.msra.mxu0 0
      %1795 = vmatprep.subr.bf16.mxu0 0
      %1796 = vmatpush1.bf16.msra.mxu0 0
      %1797 = vmatprep.subr.bf16.mxu0 0
      %1798 = vmatpush1.bf16.msra.mxu0 0
      %1799 = vmatprep.subr.bf16.mxu0 0
      %1800 = vmatpush1.bf16.msra.mxu0 0
      %1801 = vmatprep.subr.bf16.mxu0 0
      %1802 = vmatpush1.bf16.msra.mxu0 0
      %1803 = vmatprep.subr.bf16.mxu0 0
      %1804 = vmatpush1.bf16.msra.mxu0 0
      %1805 = vmatprep.subr.bf16.mxu0 0
      %1806 = vmatpush1.bf16.msra.mxu0 0
      %1807 = vmatprep.subr.bf16.mxu0 0
      %1808 = vmatpush1.bf16.msra.mxu0 0
      %1809 = vmatprep.subr.bf16.mxu0 0
      %1810 = vmatpush1.bf16.msra.mxu0 0
      %1811 = vmatprep.subr.bf16.mxu0 0
      %1812 = vmatpush1.bf16.msra.mxu0 0
      %1813 = vmatprep.mubr.bf16.mxu0 0
      %1814 = vmatmul.mubr.bf16.gmra.mrb[0].mxu0 %v1731
      %v1815 = vpop.f32.mrb[0].mxu0
      %v1816 = vadd.f32 0.0, %v1815
      %v1817 = vpop.f32.mrb[0].mxu0
      %v1818 = vpop.f32.mrb[0].mxu0
      %v1819 = vadd.f32 0.0, %v1818
      %v1820 = vpop.f32.mrb[0].mxu0
      %1821 = vmatprep.mubr.bf16.mxu0 0
      %1822 = vmatmul.mubr.bf16.gmra.mrb[0].mxu0 %v1734
      %v1823 = vpop.f32.mrb[0].mxu0
      %v1824 = vadd.f32 0.0, %v1823
      %v1825 = vpop.f32.mrb[0].mxu0
      %v1826 = vpop.f32.mrb[0].mxu0
      %v1827 = vadd.f32 0.0, %v1826
      %v1828 = vpop.f32.mrb[0].mxu0
      %1829 = vmatprep.mubr.bf16.mxu0 0
      %1830 = vmatmul.mubr.bf16.gmra.mrb[0].mxu0 %v1737
      %v1831 = vpop.f32.mrb[0].mxu0
      %v1832 = vadd.f32 0.0, %v1831
      %v1833 = vpop.f32.mrb[0].mxu0
      %v1834 = vpop.f32.mrb[0].mxu0
      %v1835 = vadd.f32 0.0, %v1834
      %v1836 = vpop.f32.mrb[0].mxu0
      %1837 = vmatprep.mubr.bf16.mxu0 0
      %1838 = vmatmul.mubr.bf16.gmra.mrb[0].mxu0 %v1740
      %v1839 = vpop.f32.mrb[0].mxu0
      %v1840 = vadd.f32 0.0, %v1839
      %v1841 = vpop.f32.mrb[0].mxu0
      %v1842 = vpop.f32.mrb[0].mxu0
      %v1843 = vadd.f32 0.0, %v1842
      %v1844 = vpop.f32.mrb[0].mxu0
      %1845 = vmatprep.mubr.bf16.mxu0 0
      %1846 = vmatmul.mubr.bf16.gmra.mrb[0].mxu0 %v1743
      %v1847 = vpop.f32.mrb[0].mxu0
      %v1848 = vadd.f32 0.0, %v1847
      %v1849 = vpop.f32.mrb[0].mxu0
      %v1850 = vpop.f32.mrb[0].mxu0
      %v1851 = vadd.f32 0.0, %v1850
      %v1852 = vpop.f32.mrb[0].mxu0
      %1853 = vmatprep.mubr.bf16.mxu0 0
      %1854 = vmatmul.mubr.bf16.gmra.mrb[0].mxu0 %v1746
      %v1855 = vpop.f32.mrb[0].mxu0
      %v1856 = vadd.f32 0.0, %v1855
      %v1857 = vpop.f32.mrb[0].mxu0
      %v1858 = vpop.f32.mrb[0].mxu0
      %v1859 = vadd.f32 0.0, %v1858
      %v1860 = vpop.f32.mrb[0].mxu0
      %1861 = vmatprep.mubr.bf16.mxu0 0
      %1862 = vmatmul.mubr.bf16.gmra.mrb[0].mxu0 %v1749
      %v1863 = vpop.f32.mrb[0].mxu0
      %v1864 = vadd.f32 0.0, %v1863
      %v1865 = vpop.f32.mrb[0].mxu0
      %v1866 = vpop.f32.mrb[0].mxu0
      %v1867 = vadd.f32 0.0, %v1866
      %v1868 = vpop.f32.mrb[0].mxu0
      %1869 = vmatprep.mubr.bf16.mxu0 0
      %1870 = vmatmul.mubr.bf16.gmra.mrb[0].mxu0 %v1752
      %v1871 = vpop.f32.mrb[0].mxu0
      %v1872 = vadd.f32 0.0, %v1871
      %v1873 = vpop.f32.mrb[0].mxu0
      %v1874 = vpop.f32.mrb[0].mxu0
      %v1875 = vadd.f32 0.0, %v1874
      %v1876 = vpop.f32.mrb[0].mxu0
      %1877 = vmatprep.mubr.bf16.mxu0 0
      %1878 = vmatmul.mubr.bf16.gmra.mrb[0].mxu0 %v1755
      %v1879 = vpop.f32.mrb[0].mxu0
      %v1880 = vadd.f32 0.0, %v1879
      %v1881 = vpop.f32.mrb[0].mxu0
      %v1882 = vpop.f32.mrb[0].mxu0
      %v1883 = vadd.f32 0.0, %v1882
      %v1884 = vpop.f32.mrb[0].mxu0
      %1885 = vmatprep.mubr.bf16.mxu0 0
      %1886 = vmatmul.mubr.bf16.gmra.mrb[0].mxu0 %v1758
      %v1887 = vpop.f32.mrb[0].mxu0
      %v1888 = vadd.f32 0.0, %v1887
      %v1889 = vpop.f32.mrb[0].mxu0
      %v1890 = vpop.f32.mrb[0].mxu0
      %v1891 = vadd.f32 0.0, %v1890
      %v1892 = vpop.f32.mrb[0].mxu0
      %1893 = vmatprep.mubr.bf16.mxu0 0
      %1894 = vmatmul.mubr.bf16.gmra.mrb[0].mxu0 %v1761
      %v1895 = vpop.f32.mrb[0].mxu0
      %v1896 = vadd.f32 0.0, %v1895
      %v1897 = vpop.f32.mrb[0].mxu0
      %v1898 = vpop.f32.mrb[0].mxu0
      %v1899 = vadd.f32 0.0, %v1898
      %v1900 = vpop.f32.mrb[0].mxu0
      %1901 = vmatprep.mubr.bf16.mxu0 0
      %1902 = vmatmul.mubr.bf16.gmra.mrb[0].mxu0 %v1764
      %v1903 = vpop.f32.mrb[0].mxu0
      %v1904 = vadd.f32 0.0, %v1903
      %v1905 = vpop.f32.mrb[0].mxu0
      %v1906 = vpop.f32.mrb[0].mxu0
      %v1907 = vadd.f32 0.0, %v1906
      %v1908 = vpop.f32.mrb[0].mxu0
      %1909 = vmatprep.mubr.bf16.mxu0 0
      %1910 = vmatmul.mubr.bf16.gmra.mrb[0].mxu0 %v1767
      %v1911 = vpop.f32.mrb[0].mxu0
      %v1912 = vadd.f32 0.0, %v1911
      %v1913 = vpop.f32.mrb[0].mxu0
      %v1914 = vpop.f32.mrb[0].mxu0
      %v1915 = vadd.f32 0.0, %v1914
      %v1916 = vpop.f32.mrb[0].mxu0
      %1917 = vmatprep.mubr.bf16.mxu0 0
      %1918 = vmatmul.mubr.bf16.gmra.mrb[0].mxu0 %v1770
      %v1919 = vpop.f32.mrb[0].mxu0
      %v1920 = vadd.f32 0.0, %v1919
      %v1921 = vpop.f32.mrb[0].mxu0
      %v1922 = vpop.f32.mrb[0].mxu0
      %v1923 = vadd.f32 0.0, %v1922
      %v1924 = vpop.f32.mrb[0].mxu0
      %1925 = vmatprep.mubr.bf16.mxu0 0
      %1926 = vmatmul.mubr.bf16.gmra.mrb[0].mxu0 %v1773
      %v1927 = vpop.f32.mrb[0].mxu0
      %v1928 = vadd.f32 0.0, %v1927
      %v1929 = vpop.f32.mrb[0].mxu0
      %v1930 = vpop.f32.mrb[0].mxu0
      %v1931 = vadd.f32 0.0, %v1930
      %v1932 = vpop.f32.mrb[0].mxu0
      %1933 = vmatprep.mubr.bf16.mxu0 0
      %1934 = vmatmul.mubr.bf16.gmra.mrb[0].mxu0 %v1776
      %v1935 = vpop.f32.mrb[0].mxu0
      %v1936 = vadd.f32 0.0, %v1935
      %v1937 = vpop.f32.mrb[0].mxu0
      %v1938 = vpop.f32.mrb[0].mxu0
      %v1939 = vadd.f32 0.0, %v1938
      %v1940 = vpop.f32.mrb[0].mxu0
      %1941 = vdwg.mxu0
      %v1942 = vadd.f32 %v1579, %v1816
      %v1943 = vadd.f32 %v1580, %v1819
      %v1944 = vadd.f32 %v1581, %v1824
      %v1945 = vadd.f32 %v1582, %v1827
      %v1946 = vadd.f32 %v1583, %v1832
      %v1947 = vadd.f32 %v1584, %v1835
      %v1948 = vadd.f32 %v1585, %v1840
      %v1949 = vadd.f32 %v1586, %v1843
      %v1950 = vadd.f32 %v1587, %v1848
      %v1951 = vadd.f32 %v1588, %v1851
      %v1952 = vadd.f32 %v1589, %v1856
      %v1953 = vadd.f32 %v1590, %v1859
      %v1954 = vadd.f32 %v1591, %v1864
      %v1955 = vadd.f32 %v1592, %v1867
      %v1956 = vadd.f32 %v1593, %v1872
      %v1957 = vadd.f32 %v1594, %v1875
      %v1958 = vadd.f32 %v1595, %v1880
      %v1959 = vadd.f32 %v1596, %v1883
      %v1960 = vadd.f32 %v1597, %v1888
      %v1961 = vadd.f32 %v1598, %v1891
      %v1962 = vadd.f32 %v1599, %v1896
      %v1963 = vadd.f32 %v1600, %v1899
      %v1964 = vadd.f32 %v1601, %v1904
      %v1965 = vadd.f32 %v1602, %v1907
      %v1966 = vadd.f32 %v1603, %v1912
      %v1967 = vadd.f32 %v1604, %v1915
      %v1968 = vadd.f32 %v1605, %v1920
      %v1969 = vadd.f32 %v1606, %v1923
      %v1970 = vadd.f32 %v1607, %v1928
      %v1971 = vadd.f32 %v1608, %v1931
      %v1972 = vadd.f32 %v1609, %v1936
      %v1973 = vadd.f32 %v1610, %v1939
      %v1974 = vld [vmem:[%s2] sm:$0x1]
      %v1976 = vlaneseq
      %v1977 = vshrl.u32 %v1976, 7
      %v1978 = vsub.s32 0, %v1977
      %v1979 = vrot.slane %v1974, %v1978
      %v1981 = vmul.f32 %v1942, %v1979
      %v1982 = vmul.f32 %v1943, %v1979
      %v1983 = vmul.f32 %v1944, %v1979
      %v1984 = vmul.f32 %v1945, %v1979
      %v1985 = vmul.f32 %v1946, %v1979
      %v1986 = vmul.f32 %v1947, %v1979
      %v1987 = vmul.f32 %v1948, %v1979
      %v1988 = vmul.f32 %v1949, %v1979
      %v1989 = vmul.f32 %v1950, %v1979
      %v1990 = vmul.f32 %v1951, %v1979
      %v1991 = vmul.f32 %v1952, %v1979
      %v1992 = vmul.f32 %v1953, %v1979
      %v1993 = vmul.f32 %v1954, %v1979
      %v1994 = vmul.f32 %v1955, %v1979
      %v1995 = vmul.f32 %v1956, %v1979
      %v1996 = vmul.f32 %v1957, %v1979
      %v1997 = vmul.f32 %v1958, %v1979
      %v1998 = vmul.f32 %v1959, %v1979
      %v1999 = vmul.f32 %v1960, %v1979
      %v2000 = vmul.f32 %v1961, %v1979
      %v2001 = vmul.f32 %v1962, %v1979
      %v2002 = vmul.f32 %v1963, %v1979
      %v2003 = vmul.f32 %v1964, %v1979
      %v2004 = vmul.f32 %v1965, %v1979
      %v2005 = vmul.f32 %v1966, %v1979
      %v2006 = vmul.f32 %v1967, %v1979
      %v2007 = vmul.f32 %v1968, %v1979
      %v2008 = vmul.f32 %v1969, %v1979
      %v2009 = vmul.f32 %v1970, %v1979
      %v2010 = vmul.f32 %v1971, %v1979
      %v2011 = vmul.f32 %v1972, %v1979
      %v2012 = vmul.f32 %v1973, %v1979
      %v2013 = vld [vmem:[%s3] sm:$0x1]
      %v2015 = vlaneseq
      %v2016 = vshrl.u32 %v2015, 7
      %v2017 = vsub.s32 0, %v2016
      %v2018 = vrot.slane %v2013, %v2017
      %v2020 = vadd.f32 %v1981, %v2018
      %v2021 = vadd.f32 %v1982, %v2018
      %v2022 = vadd.f32 %v1983, %v2018
      %v2023 = vadd.f32 %v1984, %v2018
      %v2024 = vadd.f32 %v1985, %v2018
      %v2025 = vadd.f32 %v1986, %v2018
      %v2026 = vadd.f32 %v1987, %v2018
      %v2027 = vadd.f32 %v1988, %v2018
      %v2028 = vadd.f32 %v1989, %v2018
      %v2029 = vadd.f32 %v1990, %v2018
      %v2030 = vadd.f32 %v1991, %v2018
      %v2031 = vadd.f32 %v1992, %v2018
      %v2032 = vadd.f32 %v1993, %v2018
      %v2033 = vadd.f32 %v1994, %v2018
      %v2034 = vadd.f32 %v1995, %v2018
      %v2035 = vadd.f32 %v1996, %v2018
      %v2036 = vadd.f32 %v1997, %v2018
      %v2037 = vadd.f32 %v1998, %v2018
      %v2038 = vadd.f32 %v1999, %v2018
      %v2039 = vadd.f32 %v2000, %v2018
      %v2040 = vadd.f32 %v2001, %v2018
      %v2041 = vadd.f32 %v2002, %v2018
      %v2042 = vadd.f32 %v2003, %v2018
      %v2043 = vadd.f32 %v2004, %v2018
      %v2044 = vadd.f32 %v2005, %v2018
      %v2045 = vadd.f32 %v2006, %v2018
      %v2046 = vadd.f32 %v2007, %v2018
      %v2047 = vadd.f32 %v2008, %v2018
      %v2048 = vadd.f32 %v2009, %v2018
      %v2049 = vadd.f32 %v2010, %v2018
      %v2050 = vadd.f32 %v2011, %v2018
      %v2051 = vadd.f32 %v2012, %v2018
      %vm2052 = vcmask 64512
      %2053 = vst.msk [vmem:[%s219] sm:$0xff] %vm2052, %v2020
      %2054 = vst.msk [vmem:[%s219 + $0x8] sm:$0xff] %vm2052, %v2021
      %2055 = vst.msk [vmem:[%s219 + $0x10] sm:$0xff] %vm2052, %v2022
      %2056 = vst.msk [vmem:[%s219 + $0x18] sm:$0xff] %vm2052, %v2023
      %2057 = vst.msk [vmem:[%s219 + $0x20] sm:$0xff] %vm2052, %v2024
      %2058 = vst.msk [vmem:[%s219 + $0x28] sm:$0xff] %vm2052, %v2025
      %2059 = vst.msk [vmem:[%s219 + $0x30] sm:$0xff] %vm2052, %v2026
      %2060 = vst.msk [vmem:[%s219 + $0x38] sm:$0xff] %vm2052, %v2027
      %2061 = vst.msk [vmem:[%s219 + $0x40] sm:$0xff] %vm2052, %v2028
      %2062 = vst.msk [vmem:[%s219 + $0x48] sm:$0xff] %vm2052, %v2029
      %2063 = vst.msk [vmem:[%s219 + $0x50] sm:$0xff] %vm2052, %v2030
      %2064 = vst.msk [vmem:[%s219 + $0x58] sm:$0xff] %vm2052, %v2031
      %2065 = vst.msk [vmem:[%s219 + $0x60] sm:$0xff] %vm2052, %v2032
      %2066 = vst.msk [vmem:[%s219 + $0x68] sm:$0xff] %vm2052, %v2033
      %2067 = vst.msk [vmem:[%s219 + $0x70] sm:$0xff] %vm2052, %v2034
      %2068 = vst.msk [vmem:[%s219 + $0x78] sm:$0xff] %vm2052, %v2035
      %2069 = vst.msk [vmem:[%s219 + $0x80] sm:$0xff] %vm2052, %v2036
      %2070 = vst.msk [vmem:[%s219 + $0x88] sm:$0xff] %vm2052, %v2037
      %2071 = vst.msk [vmem:[%s219 + $0x90] sm:$0xff] %vm2052, %v2038
      %2072 = vst.msk [vmem:[%s219 + $0x98] sm:$0xff] %vm2052, %v2039
      %2073 = vst.msk [vmem:[%s219 + $0xa0] sm:$0xff] %vm2052, %v2040
      %2074 = vst.msk [vmem:[%s219 + $0xa8] sm:$0xff] %vm2052, %v2041
      %2075 = vst.msk [vmem:[%s219 + $0xb0] sm:$0xff] %vm2052, %v2042
      %2076 = vst.msk [vmem:[%s219 + $0xb8] sm:$0xff] %vm2052, %v2043
      %2077 = vst.msk [vmem:[%s219 + $0xc0] sm:$0xff] %vm2052, %v2044
      %2078 = vst.msk [vmem:[%s219 + $0xc8] sm:$0xff] %vm2052, %v2045
      %2079 = vst.msk [vmem:[%s219 + $0xd0] sm:$0xff] %vm2052, %v2046
      %2080 = vst.msk [vmem:[%s219 + $0xd8] sm:$0xff] %vm2052, %v2047
      %2081 = vst.msk [vmem:[%s219 + $0xe0] sm:$0xff] %vm2052, %v2048
      %2082 = vst.msk [vmem:[%s219 + $0xe8] sm:$0xff] %vm2052, %v2049
      %2083 = vst.msk [vmem:[%s219 + $0xf0] sm:$0xff] %vm2052, %v2050
      %2084 = vst.msk [vmem:[%s219 + $0xf8] sm:$0xff] %vm2052, %v2051
      %s2085 = smul.u32 32, %s20
      %p2086 = scmp.lt.s32.totalorder %s19, 1
      %s2087 = scalar_select %p2086, %s19, 1
      %p2088 = scmp.lt.s32.totalorder %s2085, 63
      %s2089 = scalar_select %p2088, %s2085, 63
      %s2090 = smul.addr %s2087, 64
      %s2091 = sadd.s32 %s2089, %s2090
      %s2092 = smul.addr %s2091, 8
      %s2093 = scalar_lea.vmem %s4, %s2092
      // Predicated region
      $region37: #{tpu_custom_call.1} parent=35 // pred_check
        %p2094 = pneg %p136
      $region38: #{tpu_custom_call.1} parent=35 // pred_check_branch
        %2096 = sbr.rel (%p2094) target = $region40
      $region39: #{tpu_custom_call.1} parent=35 // pred_region
        %s2097 = smul.u32 32, %s20
      $region40: #{tpu_custom_call.1} parent=35 // pred_fallthru
        _
    $region36: #{tpu_custom_call.1} parent=5 // pred_fallthru
      _
    %p2098 = scmp.le.s32.totalorder 2, %s10
    // Predicated region
    $region41: #{tpu_custom_call.1} parent=5 // pred_check
      %p2099 = pneg %p2098
    $region42: #{tpu_custom_call.1} parent=5 // pred_check_branch
      %2101 = sbr.rel (%p2099) target = $region44
    $region43: #{tpu_custom_call.1} parent=5 // pred_region
      %s2102 = ssub.s32 %s10, 2
      // Predicated region
      $region45: #{tpu_custom_call.1} parent=43 // pred_check
        %p2103 = pneg %p142
      $region46: #{tpu_custom_call.1} parent=43 // pred_check_branch
        %2105 = sbr.rel (%p2103) target = $region48
      $region47: #{tpu_custom_call.1} parent=43 // pred_region
        %s2106 = smul.u32 32, %s22
        %p2107 = scmp.lt.s32.totalorder %s21, 1
        %s2108 = scalar_select %p2107, %s21, 1
        %p2109 = scmp.lt.s32.totalorder %s2106, 63
        %s2110 = scalar_select %p2109, %s2106, 63
        %s2111 = smul.addr %s2108, 64
        %s2112 = sadd.s32 %s2110, %s2111
        %s2113 = smul.addr %s2112, 8
        %s2114 = scalar_lea.vmem %s4, %s2113
      $region48: #{tpu_custom_call.1} parent=43 // pred_fallthru
        _
    $region44: #{tpu_custom_call.1} parent=5 // pred_fallthru
      _
  $region6: #{tpu_custom_call.1} parent=0 // loop_footer
    %s14 = sadd.s32 1, %s10
  $region7: #{tpu_custom_call.1} parent=0 // loop_footer_branch
    %9 = sbr.rel target = $region3
  $region8: #{tpu_custom_call.1} parent=0 // loop_exit
    _

</llo_original>
